<compile_context>
chip_gen: v7x
topology: tpu7x:2x2x1
jax: 0.10.0
libtpu: 0.0.40
codegen_flags: <defaults>
</compile_context>

<pallas_src>
import math

import jax
import jax.numpy as jnp
from jax import lax
from jax.experimental import pallas as pl
from jax.experimental.pallas import tpu as pltpu


def _make_flash_kernel(T_actual, d_out, DP, tq, tk):
    """Builds the per-(query-tile, kv-tile) flash-attention kernel body."""
    scale = 1.0 / (d_out ** 0.5)  # softmax scale uses the *logical* head dim

    def kernel(xq_ref, xkv_ref, w_ref, o_ref, m_sc, l_sc, acc_sc):
        ki = pl.program_id(1)

        # --- init accumulators on first kv step ---------------------------
        @pl.when(ki == 0)
        def _init():
            m_sc[...] = jnp.full_like(m_sc, -jnp.inf)
            l_sc[...] = jnp.zeros_like(l_sc)
            acc_sc[...] = jnp.zeros_like(acc_sc)

        w = w_ref[...]                                   # [d_in, 3*DP], resident
        # Fused projections: one MXU matmul per stream (q tile / kv tile),
        # then cheap 128-aligned lane slices.
        q = jnp.dot(xq_ref[...], w[:, :DP],
                    preferred_element_type=jnp.float32) * scale     # [tq, DP]
        kv = jnp.dot(xkv_ref[...], w[:, DP:],
                     preferred_element_type=jnp.float32)            # [tk, 2*DP]
        k = kv[:, :DP]
        v = kv[:, DP:]

        # scores = q @ k.T without materializing a transpose.
        s = lax.dot_general(q, k, (((1,), (1,)), ((), ())),
                            preferred_element_type=jnp.float32)     # [tq, tk]

        # Mask kv positions that are only padding (keeps softmax exact).
        kv_pos = ki * tk + lax.broadcasted_iota(jnp.int32, (tq, tk), 1)
        s = jnp.where(kv_pos < T_actual, s, -jnp.inf)

        # --- online softmax update ---------------------------------------
        m_prev = m_sc[...]
        m_new = jnp.maximum(m_prev, jnp.max(s, axis=-1, keepdims=True))
        alpha = jnp.exp(m_prev - m_new)
        p = jnp.exp(s - m_new)
        l_sc[...] = alpha * l_sc[...] + jnp.sum(p, axis=-1, keepdims=True)
        acc_sc[...] = alpha * acc_sc[...] + jnp.dot(
            p, v, preferred_element_type=jnp.float32)
        m_sc[...] = m_new

        # --- finalize on last kv step -------------------------------------
        @pl.when(ki == pl.num_programs(1) - 1)
        def _finalize():
            inv_l = pl.reciprocal(l_sc[...], approx=True)   # EUP, nearly free
            o_ref[...] = (acc_sc[...] * inv_l).astype(o_ref.dtype)

    return kernel


def self_attention_v1(x, w_query, w_key, w_value, *, tq=128, tk=128):
    """x: [T, d_in] f32; w_*: [d_in, d_out] f32 -> [T, d_out] f32."""
    T, d_in = x.shape
    d_out = w_query.shape[1]

    # Lane-pad the head dim to a multiple of 128 (unmasked stores / dense vregs).
    DP = pl.cdiv(d_out, 128) * 128
    # Pad the sequence so it divides both tile sizes.
    step = math.lcm(tq, tk)
    T_pad = pl.cdiv(T, step) * step

    x_pad = jnp.pad(x, ((0, T_pad - T), (0, 0)))
    # Fused + padded weight slab: [d_in, 3*DP] = [Wq | Wk | Wv] (zero-padded cols).
    w_fused = jnp.concatenate(
        [jnp.pad(w_query, ((0, 0), (0, DP - d_out))),
         jnp.pad(w_key, ((0, 0), (0, DP - d_out))),
         jnp.pad(w_value, ((0, 0), (0, DP - d_out)))],
        axis=1,
    )

    n_q, n_k = T_pad // tq, T_pad // tk
    kernel = _make_flash_kernel(T, d_out, DP, tq, tk)

    cost = pl.CostEstimate(
        flops=n_q * n_k * (2 * tq * d_in * DP + 4 * tk * d_in * DP
                           + 4 * tq * tk * DP),
        transcendentals=T_pad * T_pad,
        bytes_accessed=4 * (n_q * n_k * (tq * d_in + tk * d_in + d_in * 3 * DP)
                            + T_pad * DP),
    )

    out_pad = pl.pallas_call(
        kernel,
        out_shape=jax.ShapeDtypeStruct((T_pad, DP), x.dtype),
        grid_spec=pltpu.PrefetchScalarGridSpec(
            num_scalar_prefetch=0,
            grid=(n_q, n_k),
            in_specs=[
                # query-side x tile
                pl.BlockSpec((tq, d_in), lambda qi, ki: (qi, 0)),
                # kv-side x tile
                pl.BlockSpec((tk, d_in), lambda qi, ki: (ki, 0)),
                # fused weights, resident across the whole grid
                pl.BlockSpec((d_in, 3 * DP), lambda qi, ki: (0, 0)),
            ],
            out_specs=pl.BlockSpec((tq, DP), lambda qi, ki: (qi, 0)),
            scratch_shapes=[
                pltpu.VMEM((tq, 1), jnp.float32),    # running max m
                pltpu.VMEM((tq, 1), jnp.float32),    # running denom l
                pltpu.VMEM((tq, DP), jnp.float32),   # output accumulator
            ],
        ),
        compiler_params=pltpu.CompilerParams(
            dimension_semantics=("parallel", "arbitrary"),
            # Explicit, generation-safe limit (<= default scoped VMEM on
            # v5e/v6e/v7x); 128-sized tiles use well under 1 MiB.
            vmem_limit_bytes=32 * 1024 * 1024,
        ),
        cost_estimate=cost,
    )(x_pad, x_pad, w_fused)

    return out_pad[:T, :d_out]


def _reference(x, wq, wk, wv):
    q = x @ wq
    k = x @ wk
    v = x @ wv
    scores = q @ k.T
    w = jax.nn.softmax(scores / (k.shape[-1] ** 0.5), axis=-1)
    return w @ v


if __name__ == "__main__":
    # Same data as the chapter's `inputs` tensor: 6 tokens, d_in=3, d_out=2.
    x = jnp.array(
        [[0.43, 0.15, 0.89],
         [0.55, 0.87, 0.66],
         [0.57, 0.85, 0.64],
         [0.22, 0.58, 0.33],
         [0.77, 0.25, 0.10],
         [0.05, 0.80, 0.55]],
        dtype=jnp.float32,
    )
    d_in, d_out = x.shape[1], 2

    # Deterministic parameter init, mirroring torch.rand (uniform [0, 1)).
    key = jax.random.PRNGKey(0)
    kq, kk, kv = jax.random.split(key, 3)
    W_query = jax.random.uniform(kq, (d_in, d_out), dtype=jnp.float32)
    W_key = jax.random.uniform(kk, (d_in, d_out), dtype=jnp.float32)
    W_value = jax.random.uniform(kv, (d_in, d_out), dtype=jnp.float32)

    out = self_attention_v1(x, W_query, W_key, W_value)
    out = jax.block_until_ready(out)

    ref = _reference(x, W_query, W_key, W_value)
    assert out.shape == ref.shape, (out.shape, ref.shape)
    # Tolerance accounts for the EUP approx-reciprocal used in the softmax
    # normalization (relative error ~1e-4).
    assert jnp.allclose(out, ref, atol=1e-3, rtol=1e-3), (out, ref)

    print("KERNEL_OK")
</pallas_src>

<mosaic_0001>
module attributes {stable_mosaic.version = 11 : i64} {
  func.func @kernel(%arg0: i32, %arg1: i32, %arg2: memref<128x3xf32, #tpu.memory_space<vmem>>, %arg3: memref<128x3xf32, #tpu.memory_space<vmem>>, %arg4: memref<3x384xf32, #tpu.memory_space<vmem>>, %arg5: memref<128x128xf32, #tpu.memory_space<vmem>>, %arg6: memref<128x1xf32, #tpu.memory_space<vmem>>, %arg7: memref<128x1xf32, #tpu.memory_space<vmem>>, %arg8: memref<128x128xf32, #tpu.memory_space<vmem>>) attributes {dimension_semantics = [#tpu.dimension_semantics<parallel>, #tpu.dimension_semantics<arbitrary>], iteration_bounds = array<i64: 1, 1>, scalar_prefetch = 0 : i64, scratch_operands = 3 : i64, tpu.core_type = #tpu.core_type<tc>, window_params = [{transform_indices = @transform_0, window_bounds = array<i64: 128, 3>}, {transform_indices = @transform_1, window_bounds = array<i64: 128, 3>}, {pipeline_mode = #tpu.pipeline_mode<synchronous>, transform_indices = @transform_2, window_bounds = array<i64: 3, 384>}, {transform_indices = @transform_3, window_bounds = array<i64: 128, 128>}]} {
    %c0_i32 = arith.constant 0 : i32
    %0 = arith.cmpi eq, %arg1, %c0_i32 : i32
    %1 = arith.extui %0 : i1 to i32
    %c0_i32_0 = arith.constant 0 : i32
    %2 = arith.cmpi ne, %1, %c0_i32_0 : i32
    scf.if %2 {
      %cst_27 = arith.constant 0xFF800000 : f32
      %48 = vector.broadcast %cst_27 : f32 to vector<128x1xf32>
      %c0_28 = arith.constant 0 : index
      %c0_29 = arith.constant 0 : index
      %49 = vector.load %arg6[%c0_28, %c0_29] : memref<128x1xf32, #tpu.memory_space<vmem>>, vector<128x1xf32>
      tpu.vector_store %arg6[%c0_28, %c0_29], %48 {strides = array<i32>} : memref<128x1xf32, #tpu.memory_space<vmem>>, vector<128x1xf32>,
      %cst_30 = arith.constant 0.000000e+00 : f32
      %50 = vector.broadcast %cst_30 : f32 to vector<128x1xf32>
      %c0_31 = arith.constant 0 : index
      %c0_32 = arith.constant 0 : index
      %51 = vector.load %arg7[%c0_31, %c0_32] : memref<128x1xf32, #tpu.memory_space<vmem>>, vector<128x1xf32>
      tpu.vector_store %arg7[%c0_31, %c0_32], %50 {strides = array<i32>} : memref<128x1xf32, #tpu.memory_space<vmem>>, vector<128x1xf32>,
      %cst_33 = arith.constant 0.000000e+00 : f32
      %52 = vector.broadcast %cst_33 : f32 to vector<128x128xf32>
      %c0_34 = arith.constant 0 : index
      %c0_35 = arith.constant 0 : index
      %53 = vector.load %arg8[%c0_34, %c0_35] : memref<128x128xf32, #tpu.memory_space<vmem>>, vector<128x128xf32>
      tpu.vector_store %arg8[%c0_34, %c0_35], %52 {strides = array<i32>} : memref<128x128xf32, #tpu.memory_space<vmem>>, vector<128x128xf32>,
    } else {
    }
    %c0 = arith.constant 0 : index
    %c0_1 = arith.constant 0 : index
    %3 = vector.load %arg4[%c0, %c0_1] : memref<3x384xf32, #tpu.memory_space<vmem>>, vector<3x384xf32>
    %c0_2 = arith.constant 0 : index
    %c0_3 = arith.constant 0 : index
    %4 = vector.load %arg2[%c0_2, %c0_3] : memref<128x3xf32, #tpu.memory_space<vmem>>, vector<128x3xf32>
    %5 = vector.extract_strided_slice %3 {offsets = [0, 0], sizes = [3, 128], strides = [1, 1]} : vector<3x384xf32> to vector<3x128xf32>
    %cst = arith.constant dense<0.000000e+00> : vector<128x128xf32>
    %6 = tpu.matmul %4, %5, %cst {dimension_numbers = #tpu.dot_dimension_numbers<[1], [0], [0], [1], [0, 0, 1, 1], [], []>} : vector<128x3xf32>, vector<3x128xf32>, vector<128x128xf32> -> vector<128x128xf32>
    %cst_4 = arith.constant 0.707106769 : f32
    %7 = vector.broadcast %cst_4 : f32 to vector<128x128xf32>
    %8 = arith.mulf %6, %7 : vector<128x128xf32>
    %c0_5 = arith.constant 0 : index
    %c0_6 = arith.constant 0 : index
    %9 = vector.load %arg3[%c0_5, %c0_6] : memref<128x3xf32, #tpu.memory_space<vmem>>, vector<128x3xf32>
    %10 = vector.extract_strided_slice %3 {offsets = [0, 128], sizes = [3, 256], strides = [1, 1]} : vector<3x384xf32> to vector<3x256xf32>
    %cst_7 = arith.constant dense<0.000000e+00> : vector<128x256xf32>
    %11 = tpu.matmul %9, %10, %cst_7 {dimension_numbers = #tpu.dot_dimension_numbers<[1], [0], [0], [1], [0, 0, 1, 1], [], []>} : vector<128x3xf32>, vector<3x256xf32>, vector<128x256xf32> -> vector<128x256xf32>
    %12 = vector.extract_strided_slice %11 {offsets = [0, 0], sizes = [128, 128], strides = [1, 1]} : vector<128x256xf32> to vector<128x128xf32>
    %13 = vector.extract_strided_slice %11 {offsets = [0, 128], sizes = [128, 128], strides = [1, 1]} : vector<128x256xf32> to vector<128x128xf32>
    %cst_8 = arith.constant dense<0.000000e+00> : vector<128x128xf32>
    %14 = tpu.matmul %8, %12, %cst_8 {dimension_numbers = #tpu.dot_dimension_numbers<[1], [1], [0], [0], [0, 0, 1, 0], [], []>} : vector<128x128xf32>, vector<128x128xf32>, vector<128x128xf32> -> vector<128x128xf32>
    %c128_i32 = arith.constant 128 : i32
    %15 = arith.muli %arg1, %c128_i32 : i32
    %16 = tpu.iota {dimensions = array<i32: 1>} : vector<128x128xi32>
    %17 = vector.broadcast %15 : i32 to vector<128x128xi32>
    %18 = arith.addi %17, %16 : vector<128x128xi32>
    %c6_i32 = arith.constant 6 : i32
    %19 = vector.broadcast %c6_i32 : i32 to vector<128x128xi32>
    %20 = arith.cmpi slt, %18, %19 : vector<128x128xi32>
    %cst_9 = arith.constant 0xFF800000 : f32
    %21 = vector.broadcast %cst_9 : f32 to vector<128x128xf32>
    %22 = arith.select %20, %14, %21 : vector<128x128xi1>, vector<128x128xf32>
    %c0_10 = arith.constant 0 : index
    %c0_11 = arith.constant 0 : index
    %23 = vector.load %arg6[%c0_10, %c0_11] : memref<128x1xf32, #tpu.memory_space<vmem>>, vector<128x1xf32>
    %cst_12 = arith.constant dense<0xFF800000> : vector<128xf32>
    %24 = vector.multi_reduction <maximumf>, %22, %cst_12 [1] : vector<128x128xf32> to vector<128xf32>
    %25 = vector.shape_cast %24 : vector<128xf32> to vector<128x1xf32>
    %26 = arith.maximumf %23, %25 : vector<128x1xf32>
    %27 = arith.subf %23, %26 : vector<128x1xf32>
    %28 = math.exp %27 : vector<128x1xf32>
    %29 = vector.broadcast %26 : vector<128x1xf32> to vector<128x128xf32>
    %30 = arith.subf %22, %29 : vector<128x128xf32>
    %31 = math.exp %30 : vector<128x128xf32>
    %c0_13 = arith.constant 0 : index
    %c0_14 = arith.constant 0 : index
    %32 = vector.load %arg7[%c0_13, %c0_14] : memref<128x1xf32, #tpu.memory_space<vmem>>, vector<128x1xf32>
    %33 = arith.mulf %28, %32 : vector<128x1xf32>
    %cst_15 = arith.constant dense<0.000000e+00> : vector<128xf32>
    %34 = vector.multi_reduction <add>, %31, %cst_15 [1] : vector<128x128xf32> to vector<128xf32>
    %35 = vector.shape_cast %34 : vector<128xf32> to vector<128x1xf32>
    %36 = arith.addf %33, %35 : vector<128x1xf32>
    %c0_16 = arith.constant 0 : index
    %c0_17 = arith.constant 0 : index
    %37 = vector.load %arg7[%c0_16, %c0_17] : memref<128x1xf32, #tpu.memory_space<vmem>>, vector<128x1xf32>
    tpu.vector_store %arg7[%c0_16, %c0_17], %36 {strides = array<i32>} : memref<128x1xf32, #tpu.memory_space<vmem>>, vector<128x1xf32>,
    %c0_18 = arith.constant 0 : index
    %c0_19 = arith.constant 0 : index
    %38 = vector.load %arg8[%c0_18, %c0_19] : memref<128x128xf32, #tpu.memory_space<vmem>>, vector<128x128xf32>
    %39 = vector.broadcast %28 : vector<128x1xf32> to vector<128x128xf32>
    %40 = arith.mulf %39, %38 : vector<128x128xf32>
    %cst_20 = arith.constant dense<0.000000e+00> : vector<128x128xf32>
    %41 = tpu.matmul %31, %13, %cst_20 {dimension_numbers = #tpu.dot_dimension_numbers<[1], [0], [0], [1], [0, 0, 1, 1], [], []>} : vector<128x128xf32>, vector<128x128xf32>, vector<128x128xf32> -> vector<128x128xf32>
    %42 = arith.addf %40, %41 : vector<128x128xf32>
    %c0_21 = arith.constant 0 : index
    %c0_22 = arith.constant 0 : index
    %43 = vector.load %arg8[%c0_21, %c0_22] : memref<128x128xf32, #tpu.memory_space<vmem>>, vector<128x128xf32>
    tpu.vector_store %arg8[%c0_21, %c0_22], %42 {strides = array<i32>} : memref<128x128xf32, #tpu.memory_space<vmem>>, vector<128x128xf32>,
    %c0_23 = arith.constant 0 : index
    %c0_24 = arith.constant 0 : index
    %44 = vector.load %arg6[%c0_23, %c0_24] : memref<128x1xf32, #tpu.memory_space<vmem>>, vector<128x1xf32>
    tpu.vector_store %arg6[%c0_23, %c0_24], %26 {strides = array<i32>} : memref<128x1xf32, #tpu.memory_space<vmem>>, vector<128x1xf32>,
    %c0_i32_25 = arith.constant 0 : i32
    %45 = arith.cmpi eq, %arg1, %c0_i32_25 : i32
    %46 = arith.extui %45 : i1 to i32
    %c0_i32_26 = arith.constant 0 : i32
    %47 = arith.cmpi ne, %46, %c0_i32_26 : i32
    scf.if %47 {
      %c0_27 = arith.constant 0 : index
      %c0_28 = arith.constant 0 : index
      %48 = vector.load %arg7[%c0_27, %c0_28] : memref<128x1xf32, #tpu.memory_space<vmem>>, vector<128x1xf32>
      %49 = tpu.reciprocal %48 {approx = true} : vector<128x1xf32> -> vector<128x1xf32>
      %c0_29 = arith.constant 0 : index
      %c0_30 = arith.constant 0 : index
      %50 = vector.load %arg8[%c0_29, %c0_30] : memref<128x128xf32, #tpu.memory_space<vmem>>, vector<128x128xf32>
      %51 = vector.broadcast %49 : vector<128x1xf32> to vector<128x128xf32>
      %52 = arith.mulf %50, %51 : vector<128x128xf32>
      %c0_31 = arith.constant 0 : index
      %c0_32 = arith.constant 0 : index
      %53 = vector.load %arg5[%c0_31, %c0_32] : memref<128x128xf32, #tpu.memory_space<vmem>>, vector<128x128xf32>
      tpu.vector_store %arg5[%c0_31, %c0_32], %52 {strides = array<i32>} : memref<128x128xf32, #tpu.memory_space<vmem>>, vector<128x128xf32>,
    } else {
    }
    return
  }
  func.func @transform_0(%arg0: i32, %arg1: i32) -> (i32, i32) {
    %c0_i32 = arith.constant 0 : i32
    %c0_i32_0 = arith.constant 0 : i32
    return %arg0, %c0_i32 : i32, i32
  }
  func.func @transform_1(%arg0: i32, %arg1: i32) -> (i32, i32) {
    %c0_i32 = arith.constant 0 : i32
    %c0_i32_0 = arith.constant 0 : i32
    return %arg1, %c0_i32 : i32, i32
  }
  func.func @transform_2(%arg0: i32, %arg1: i32) -> (i32, i32) {
    %c0_i32 = arith.constant 0 : i32
    %c0_i32_0 = arith.constant 0 : i32
    %c0_i32_1 = arith.constant 0 : i32
    return %c0_i32, %c0_i32_0 : i32, i32
  }
  func.func @transform_3(%arg0: i32, %arg1: i32) -> (i32, i32) {
    %c0_i32 = arith.constant 0 : i32
    %c0_i32_0 = arith.constant 0 : i32
    return %arg0, %c0_i32 : i32, i32
  }
}

</mosaic_0001>

<llo_original>
// kernel: tpu_custom_call.1
$region0: #{tpu_custom_call.1}
  #allocation0 [shape = 'u32[]', space=smem, size = 0x4, offset = 0x4, fixed_abs, tag = 'smem constant byte address 0x4 - core index']
  #allocation1 [shape = 'u32[144,128]{1,0:T(1,128)}', space=vmem, size = 0x12000, scoped, tag = 'internal scratch']
  #allocation2 [shape = 'f32[128,1]{1,0:T(8,128)}', space=vmem, size = 0x10000, scoped, tag = 'scratch operand']
  #allocation3 [shape = 'f32[128,1]{1,0:T(8,128)}', space=vmem, size = 0x10000, scoped, tag = 'scratch operand']
  #allocation4 [shape = 'f32[128,128]{1,0:T(8,128)}', space=vmem, size = 0x10000, scoped, tag = 'scratch operand']
  %s0 = inlined_call_operand.vmem [shape: f32[128,3], index: 0, kind: input, shape index: {}]
  %s1 = inlined_call_operand.vmem [shape: f32[128,3], index: 1, kind: input, shape index: {}]
  %s2 = inlined_call_operand.vmem [shape: f32[3,384], index: 2, kind: input, shape index: {}]
  %s3 = inlined_call_operand.hbm [shape: f32[128,128], index: 3, kind: output, shape index: {}]
  %s4 = sld [smem:[#allocation0]]
  $region30: #{tpu_custom_call.1} parent=0
    _
  %s6 = ssub.s32 1, %s4
  %s7 = scalar_select 0, %s6, %s4
  $region1: #{tpu_custom_call.1} parent=0
    #allocation5 [shape = 'u8[65536]{0}', space=vmem, size = 0x10000, scoped, tag = 'output window, operand 0, single buffered']
    #allocation6 [shape = 's32[1]{0}', space=sflag, size = 0x4, scoped, tag = 'scoped memory for tpu_custom_call.1']
    %8 = vsyncpa [#allocation6], 0
    // Predicated region
    $region2: #{tpu_custom_call.1} parent=1 // pred_check
      _
    $region3: #{tpu_custom_call.1} parent=1 // pred_check_branch
      %10 = sbr.rel (0) target = $region5
    $region4: #{tpu_custom_call.1} parent=1 // pred_region
      _
    $region5: #{tpu_custom_call.1} parent=1 // pred_fallthru
      _
    // Predicated region
    $region6: #{tpu_custom_call.1} parent=1 // pred_check
      _
    $region7: #{tpu_custom_call.1} parent=1 // pred_check_branch
      %12 = sbr.rel (0) target = $region9
    $region8: #{tpu_custom_call.1} parent=1 // pred_region
      _
    $region9: #{tpu_custom_call.1} parent=1 // pred_fallthru
      _
    // Predicated region
    $region10: #{tpu_custom_call.1} parent=1 // pred_check
      _
    $region11: #{tpu_custom_call.1} parent=1 // pred_check_branch
      %14 = sbr.rel (0) target = $region13
    $region12: #{tpu_custom_call.1} parent=1 // pred_region
      _
    $region13: #{tpu_custom_call.1} parent=1 // pred_fallthru
      _
    %p15 = scmp.eq.s32.totalorder 0, 0
    // Predicated region
    $region14: #{tpu_custom_call.1} parent=1 // pred_check
      %p16 = pneg %p15
    $region15: #{tpu_custom_call.1} parent=1 // pred_check_branch
      %18 = sbr.rel (%p16) target = $region17
    $region16: #{tpu_custom_call.1} parent=1 // pred_region
      %vm19 = vcmask 7168
      %20 = vst.msk [vmem:[#allocation2] sm:$0xff] %vm19, -inf
      %21 = vst.msk [vmem:[#allocation2 + $0x8] sm:$0xff] %vm19, -inf
      %22 = vst.msk [vmem:[#allocation2 + $0x10] sm:$0xff] %vm19, -inf
      %23 = vst.msk [vmem:[#allocation2 + $0x18] sm:$0xff] %vm19, -inf
      %24 = vst.msk [vmem:[#allocation2 + $0x20] sm:$0xff] %vm19, -inf
      %25 = vst.msk [vmem:[#allocation2 + $0x28] sm:$0xff] %vm19, -inf
      %26 = vst.msk [vmem:[#allocation2 + $0x30] sm:$0xff] %vm19, -inf
      %27 = vst.msk [vmem:[#allocation2 + $0x38] sm:$0xff] %vm19, -inf
      %28 = vst.msk [vmem:[#allocation2 + $0x40] sm:$0xff] %vm19, -inf
      %29 = vst.msk [vmem:[#allocation2 + $0x48] sm:$0xff] %vm19, -inf
      %30 = vst.msk [vmem:[#allocation2 + $0x50] sm:$0xff] %vm19, -inf
      %31 = vst.msk [vmem:[#allocation2 + $0x58] sm:$0xff] %vm19, -inf
      %32 = vst.msk [vmem:[#allocation2 + $0x60] sm:$0xff] %vm19, -inf
      %33 = vst.msk [vmem:[#allocation2 + $0x68] sm:$0xff] %vm19, -inf
      %34 = vst.msk [vmem:[#allocation2 + $0x70] sm:$0xff] %vm19, -inf
      %35 = vst.msk [vmem:[#allocation2 + $0x78] sm:$0xff] %vm19, -inf
      %36 = vst.msk [vmem:[#allocation3] sm:$0xff] %vm19, 0.0
      %37 = vst.msk [vmem:[#allocation3 + $0x8] sm:$0xff] %vm19, 0.0
      %38 = vst.msk [vmem:[#allocation3 + $0x10] sm:$0xff] %vm19, 0.0
      %39 = vst.msk [vmem:[#allocation3 + $0x18] sm:$0xff] %vm19, 0.0
      %40 = vst.msk [vmem:[#allocation3 + $0x20] sm:$0xff] %vm19, 0.0
      %41 = vst.msk [vmem:[#allocation3 + $0x28] sm:$0xff] %vm19, 0.0
      %42 = vst.msk [vmem:[#allocation3 + $0x30] sm:$0xff] %vm19, 0.0
      %43 = vst.msk [vmem:[#allocation3 + $0x38] sm:$0xff] %vm19, 0.0
      %44 = vst.msk [vmem:[#allocation3 + $0x40] sm:$0xff] %vm19, 0.0
      %45 = vst.msk [vmem:[#allocation3 + $0x48] sm:$0xff] %vm19, 0.0
      %46 = vst.msk [vmem:[#allocation3 + $0x50] sm:$0xff] %vm19, 0.0
      %47 = vst.msk [vmem:[#allocation3 + $0x58] sm:$0xff] %vm19, 0.0
      %48 = vst.msk [vmem:[#allocation3 + $0x60] sm:$0xff] %vm19, 0.0
      %49 = vst.msk [vmem:[#allocation3 + $0x68] sm:$0xff] %vm19, 0.0
      %50 = vst.msk [vmem:[#allocation3 + $0x70] sm:$0xff] %vm19, 0.0
      %51 = vst.msk [vmem:[#allocation3 + $0x78] sm:$0xff] %vm19, 0.0
      %52 = vst [vmem:[#allocation4] sm:$0xff] 0.0
      %53 = vst [vmem:[#allocation4 + $0x8] sm:$0xff] 0.0
      %54 = vst [vmem:[#allocation4 + $0x10] sm:$0xff] 0.0
      %55 = vst [vmem:[#allocation4 + $0x18] sm:$0xff] 0.0
      %56 = vst [vmem:[#allocation4 + $0x20] sm:$0xff] 0.0
      %57 = vst [vmem:[#allocation4 + $0x28] sm:$0xff] 0.0
      %58 = vst [vmem:[#allocation4 + $0x30] sm:$0xff] 0.0
      %59 = vst [vmem:[#allocation4 + $0x38] sm:$0xff] 0.0
      %60 = vst [vmem:[#allocation4 + $0x40] sm:$0xff] 0.0
      %61 = vst [vmem:[#allocation4 + $0x48] sm:$0xff] 0.0
      %62 = vst [vmem:[#allocation4 + $0x50] sm:$0xff] 0.0
      %63 = vst [vmem:[#allocation4 + $0x58] sm:$0xff] 0.0
      %64 = vst [vmem:[#allocation4 + $0x60] sm:$0xff] 0.0
      %65 = vst [vmem:[#allocation4 + $0x68] sm:$0xff] 0.0
      %66 = vst [vmem:[#allocation4 + $0x70] sm:$0xff] 0.0
      %67 = vst [vmem:[#allocation4 + $0x78] sm:$0xff] 0.0
    $region17: #{tpu_custom_call.1} parent=1 // pred_fallthru
      _
    %v68 = vld [vmem:[%s2] sm:$0x77]
    %v69 = vld [vmem:[%s2 + $0x8] sm:$0x7]
    %v70 = vld [vmem:[%s0] sm:$0xff]
    %v71 = vld [vmem:[%s0 + $0x8] sm:$0xff]
    %v72 = vld [vmem:[%s0 + $0x10] sm:$0xff]
    %v73 = vld [vmem:[%s0 + $0x18] sm:$0xff]
    %v74 = vld [vmem:[%s0 + $0x20] sm:$0xff]
    %v75 = vld [vmem:[%s0 + $0x28] sm:$0xff]
    %v76 = vld [vmem:[%s0 + $0x30] sm:$0xff]
    %v77 = vld [vmem:[%s0 + $0x38] sm:$0xff]
    %v78 = vld [vmem:[%s0 + $0x40] sm:$0xff]
    %v79 = vld [vmem:[%s0 + $0x48] sm:$0xff]
    %v80 = vld [vmem:[%s0 + $0x50] sm:$0xff]
    %v81 = vld [vmem:[%s0 + $0x58] sm:$0xff]
    %v82 = vld [vmem:[%s0 + $0x60] sm:$0xff]
    %v83 = vld [vmem:[%s0 + $0x68] sm:$0xff]
    %v84 = vld [vmem:[%s0 + $0x70] sm:$0xff]
    %v85 = vld [vmem:[%s0 + $0x78] sm:$0xff]
    %vm86 = vcmask 23552
    %v88 = vsel %vm86, %v70, 0
    %v91 = vsel %vm86, %v71, 0
    %v94 = vsel %vm86, %v72, 0
    %v97 = vsel %vm86, %v73, 0
    %v100 = vsel %vm86, %v74, 0
    %v103 = vsel %vm86, %v75, 0
    %v106 = vsel %vm86, %v76, 0
    %v109 = vsel %vm86, %v77, 0
    %v112 = vsel %vm86, %v78, 0
    %v115 = vsel %vm86, %v79, 0
    %v118 = vsel %vm86, %v80, 0
    %v121 = vsel %vm86, %v81, 0
    %v124 = vsel %vm86, %v82, 0
    %v127 = vsel %vm86, %v83, 0
    %v130 = vsel %vm86, %v84, 0
    %v133 = vsel %vm86, %v85, 0
    %vm135 = vcmask 1042432
    %v137 = vsel %vm135, %v68, 0
    %139 = vmatprep.subr.mxu0 0.0
    %140 = vmatpush1.msra.mxu0 %v137
    %141 = vmatprep.subr.mxu0 0.0
    %142 = vmatpush1.msra.mxu0 0.0
    %143 = vmatprep.subr.mxu0 0.0
    %144 = vmatpush1.msra.mxu0 0.0
    %145 = vmatprep.subr.mxu0 0.0
    %146 = vmatpush1.msra.mxu0 0.0
    %147 = vmatprep.subr.mxu0 0.0
    %148 = vmatpush1.msra.mxu0 0.0
    %149 = vmatprep.subr.mxu0 0.0
    %150 = vmatpush1.msra.mxu0 0.0
    %151 = vmatprep.subr.mxu0 0.0
    %152 = vmatpush1.msra.mxu0 0.0
    %153 = vmatprep.subr.mxu0 0.0
    %154 = vmatpush1.msra.mxu0 0.0
    %155 = vmatprep.subr.mxu0 0.0
    %156 = vmatpush1.msra.mxu0 0.0
    %157 = vmatprep.subr.mxu0 0.0
    %158 = vmatpush1.msra.mxu0 0.0
    %159 = vmatprep.subr.mxu0 0.0
    %160 = vmatpush1.msra.mxu0 0.0
    %161 = vmatprep.subr.mxu0 0.0
    %162 = vmatpush1.msra.mxu0 0.0
    %163 = vmatprep.subr.mxu0 0.0
    %164 = vmatpush1.msra.mxu0 0.0
    %165 = vmatprep.subr.mxu0 0.0
    %166 = vmatpush1.msra.mxu0 0.0
    %167 = vmatprep.subr.mxu0 0.0
    %168 = vmatpush1.msra.mxu0 0.0
    %169 = vmatprep.subr.mxu0 0.0
    %170 = vmatpush1.msra.mxu0 0.0
    %171 = vmatprep.subr.mxu0 0.0
    %172 = vmatpush1.msra.mxu0 0.0
    %173 = vmatprep.subr.mxu0 0.0
    %174 = vmatpush1.msra.mxu0 0.0
    %175 = vmatprep.subr.mxu0 0.0
    %176 = vmatpush1.msra.mxu0 0.0
    %177 = vmatprep.subr.mxu0 0.0
    %178 = vmatpush1.msra.mxu0 0.0
    %179 = vmatprep.subr.mxu0 0.0
    %180 = vmatpush1.msra.mxu0 0.0
    %181 = vmatprep.subr.mxu0 0.0
    %182 = vmatpush1.msra.mxu0 0.0
    %183 = vmatprep.subr.mxu0 0.0
    %184 = vmatpush1.msra.mxu0 0.0
    %185 = vmatprep.subr.mxu0 0.0
    %186 = vmatpush1.msra.mxu0 0.0
    %187 = vmatprep.subr.mxu0 0.0
    %188 = vmatpush1.msra.mxu0 0.0
    %189 = vmatprep.subr.mxu0 0.0
    %190 = vmatpush1.msra.mxu0 0.0
    %191 = vmatprep.subr.mxu0 0.0
    %192 = vmatpush1.msra.mxu0 0.0
    %193 = vmatprep.subr.mxu0 0.0
    %194 = vmatpush1.msra.mxu0 0.0
    %195 = vmatprep.subr.mxu0 0.0
    %196 = vmatpush1.msra.mxu0 0.0
    %197 = vmatprep.subr.mxu0 0.0
    %198 = vmatpush1.msra.mxu0 0.0
    %199 = vmatprep.subr.mxu0 0.0
    %200 = vmatpush1.msra.mxu0 0.0
    %201 = vmatprep.subr.mxu0 0.0
    %202 = vmatpush1.msra.mxu0 0.0
    %203 = vmatprep.mubr.f32.mxu0 0.0
    %204 = vmatmul.mubr.f32.gmra.mrb[0].mxu0 %v88
    %v205 = vpop.f32.mrb[0].mxu0
    %v206 = vadd.f32 0.0, %v205
    %v207 = vpop.f32.mrb[0].mxu0
    %208 = vmatprep.mubr.f32.mxu0 0.0
    %209 = vmatmul.mubr.f32.gmra.mrb[0].mxu0 %v91
    %v210 = vpop.f32.mrb[0].mxu0
    %v211 = vadd.f32 0.0, %v210
    %v212 = vpop.f32.mrb[0].mxu0
    %213 = vmatprep.mubr.f32.mxu0 0.0
    %214 = vmatmul.mubr.f32.gmra.mrb[0].mxu0 %v94
    %v215 = vpop.f32.mrb[0].mxu0
    %v216 = vadd.f32 0.0, %v215
    %v217 = vpop.f32.mrb[0].mxu0
    %218 = vmatprep.mubr.f32.mxu0 0.0
    %219 = vmatmul.mubr.f32.gmra.mrb[0].mxu0 %v97
    %v220 = vpop.f32.mrb[0].mxu0
    %v221 = vadd.f32 0.0, %v220
    %v222 = vpop.f32.mrb[0].mxu0
    %223 = vmatprep.mubr.f32.mxu0 0.0
    %224 = vmatmul.mubr.f32.gmra.mrb[0].mxu0 %v100
    %v225 = vpop.f32.mrb[0].mxu0
    %v226 = vadd.f32 0.0, %v225
    %v227 = vpop.f32.mrb[0].mxu0
    %228 = vmatprep.mubr.f32.mxu0 0.0
    %229 = vmatmul.mubr.f32.gmra.mrb[0].mxu0 %v103
    %v230 = vpop.f32.mrb[0].mxu0
    %v231 = vadd.f32 0.0, %v230
    %v232 = vpop.f32.mrb[0].mxu0
    %233 = vmatprep.mubr.f32.mxu0 0.0
    %234 = vmatmul.mubr.f32.gmra.mrb[0].mxu0 %v106
    %v235 = vpop.f32.mrb[0].mxu0
    %v236 = vadd.f32 0.0, %v235
    %v237 = vpop.f32.mrb[0].mxu0
    %238 = vmatprep.mubr.f32.mxu0 0.0
    %239 = vmatmul.mubr.f32.gmra.mrb[0].mxu0 %v109
    %v240 = vpop.f32.mrb[0].mxu0
    %v241 = vadd.f32 0.0, %v240
    %v242 = vpop.f32.mrb[0].mxu0
    %243 = vmatprep.mubr.f32.mxu0 0.0
    %244 = vmatmul.mubr.f32.gmra.mrb[0].mxu0 %v112
    %v245 = vpop.f32.mrb[0].mxu0
    %v246 = vadd.f32 0.0, %v245
    %v247 = vpop.f32.mrb[0].mxu0
    %248 = vmatprep.mubr.f32.mxu0 0.0
    %249 = vmatmul.mubr.f32.gmra.mrb[0].mxu0 %v115
    %v250 = vpop.f32.mrb[0].mxu0
    %v251 = vadd.f32 0.0, %v250
    %v252 = vpop.f32.mrb[0].mxu0
    %253 = vmatprep.mubr.f32.mxu0 0.0
    %254 = vmatmul.mubr.f32.gmra.mrb[0].mxu0 %v118
    %v255 = vpop.f32.mrb[0].mxu0
    %v256 = vadd.f32 0.0, %v255
    %v257 = vpop.f32.mrb[0].mxu0
    %258 = vmatprep.mubr.f32.mxu0 0.0
    %259 = vmatmul.mubr.f32.gmra.mrb[0].mxu0 %v121
    %v260 = vpop.f32.mrb[0].mxu0
    %v261 = vadd.f32 0.0, %v260
    %v262 = vpop.f32.mrb[0].mxu0
    %263 = vmatprep.mubr.f32.mxu0 0.0
    %264 = vmatmul.mubr.f32.gmra.mrb[0].mxu0 %v124
    %v265 = vpop.f32.mrb[0].mxu0
    %v266 = vadd.f32 0.0, %v265
    %v267 = vpop.f32.mrb[0].mxu0
    %268 = vmatprep.mubr.f32.mxu0 0.0
    %269 = vmatmul.mubr.f32.gmra.mrb[0].mxu0 %v127
    %v270 = vpop.f32.mrb[0].mxu0
    %v271 = vadd.f32 0.0, %v270
    %v272 = vpop.f32.mrb[0].mxu0
    %273 = vmatprep.mubr.f32.mxu0 0.0
    %274 = vmatmul.mubr.f32.gmra.mrb[0].mxu0 %v130
    %v275 = vpop.f32.mrb[0].mxu0
    %v276 = vadd.f32 0.0, %v275
    %v277 = vpop.f32.mrb[0].mxu0
    %278 = vmatprep.mubr.f32.mxu0 0.0
    %279 = vmatmul.mubr.f32.gmra.mrb[0].mxu0 %v133
    %v280 = vpop.f32.mrb[0].mxu0
    %v281 = vadd.f32 0.0, %v280
    %v282 = vpop.f32.mrb[0].mxu0
    %283 = vdwg.mxu0
    %v284 = vmul.f32 %v206, 0.70710677
    %v285 = vmul.f32 %v211, 0.70710677
    %v286 = vmul.f32 %v216, 0.70710677
    %v287 = vmul.f32 %v221, 0.70710677
    %v288 = vmul.f32 %v226, 0.70710677
    %v289 = vmul.f32 %v231, 0.70710677
    %v290 = vmul.f32 %v236, 0.70710677
    %v291 = vmul.f32 %v241, 0.70710677
    %v292 = vmul.f32 %v246, 0.70710677
    %v293 = vmul.f32 %v251, 0.70710677
    %v294 = vmul.f32 %v256, 0.70710677
    %v295 = vmul.f32 %v261, 0.70710677
    %v296 = vmul.f32 %v266, 0.70710677
    %v297 = vmul.f32 %v271, 0.70710677
    %v298 = vmul.f32 %v276, 0.70710677
    %v299 = vmul.f32 %v281, 0.70710677
    %v300 = vld [vmem:[%s1] sm:$0xff]
    %v301 = vld [vmem:[%s1 + $0x8] sm:$0xff]
    %v302 = vld [vmem:[%s1 + $0x10] sm:$0xff]
    %v303 = vld [vmem:[%s1 + $0x18] sm:$0xff]
    %v304 = vld [vmem:[%s1 + $0x20] sm:$0xff]
    %v305 = vld [vmem:[%s1 + $0x28] sm:$0xff]
    %v306 = vld [vmem:[%s1 + $0x30] sm:$0xff]
    %v307 = vld [vmem:[%s1 + $0x38] sm:$0xff]
    %v308 = vld [vmem:[%s1 + $0x40] sm:$0xff]
    %v309 = vld [vmem:[%s1 + $0x48] sm:$0xff]
    %v310 = vld [vmem:[%s1 + $0x50] sm:$0xff]
    %v311 = vld [vmem:[%s1 + $0x58] sm:$0xff]
    %v312 = vld [vmem:[%s1 + $0x60] sm:$0xff]
    %v313 = vld [vmem:[%s1 + $0x68] sm:$0xff]
    %v314 = vld [vmem:[%s1 + $0x70] sm:$0xff]
    %v315 = vld [vmem:[%s1 + $0x78] sm:$0xff]
    %v317 = vcombine.high %v68, %v68
    %v319 = vsel %vm86, %v300, 0
    %v322 = vsel %vm86, %v301, 0
    %v325 = vsel %vm86, %v302, 0
    %v328 = vsel %vm86, %v303, 0
    %v331 = vsel %vm86, %v304, 0
    %v334 = vsel %vm86, %v305, 0
    %v337 = vsel %vm86, %v306, 0
    %v340 = vsel %vm86, %v307, 0
    %v343 = vsel %vm86, %v308, 0
    %v346 = vsel %vm86, %v309, 0
    %v349 = vsel %vm86, %v310, 0
    %v352 = vsel %vm86, %v311, 0
    %v355 = vsel %vm86, %v312, 0
    %v358 = vsel %vm86, %v313, 0
    %v361 = vsel %vm86, %v314, 0
    %v364 = vsel %vm86, %v315, 0
    %v366 = vsel %vm135, %v317, 0
    %v368 = vsel %vm135, %v69, 0
    %370 = vmatprep.subr.mxu0 %v368
    %371 = vmatpush1.msra.mxu0 %v366
    %372 = vmatprep.subr.mxu0 0.0
    %373 = vmatpush1.msra.mxu0 0.0
    %374 = vmatprep.subr.mxu0 0.0
    %375 = vmatpush1.msra.mxu0 0.0
    %376 = vmatprep.subr.mxu0 0.0
    %377 = vmatpush1.msra.mxu0 0.0
    %378 = vmatprep.subr.mxu0 0.0
    %379 = vmatpush1.msra.mxu0 0.0
    %380 = vmatprep.subr.mxu0 0.0
    %381 = vmatpush1.msra.mxu0 0.0
    %382 = vmatprep.subr.mxu0 0.0
    %383 = vmatpush1.msra.mxu0 0.0
    %384 = vmatprep.subr.mxu0 0.0
    %385 = vmatpush1.msra.mxu0 0.0
    %386 = vmatprep.subr.mxu0 0.0
    %387 = vmatpush1.msra.mxu0 0.0
    %388 = vmatprep.subr.mxu0 0.0
    %389 = vmatpush1.msra.mxu0 0.0
    %390 = vmatprep.subr.mxu0 0.0
    %391 = vmatpush1.msra.mxu0 0.0
    %392 = vmatprep.subr.mxu0 0.0
    %393 = vmatpush1.msra.mxu0 0.0
    %394 = vmatprep.subr.mxu0 0.0
    %395 = vmatpush1.msra.mxu0 0.0
    %396 = vmatprep.subr.mxu0 0.0
    %397 = vmatpush1.msra.mxu0 0.0
    %398 = vmatprep.subr.mxu0 0.0
    %399 = vmatpush1.msra.mxu0 0.0
    %400 = vmatprep.subr.mxu0 0.0
    %401 = vmatpush1.msra.mxu0 0.0
    %402 = vmatprep.subr.mxu0 0.0
    %403 = vmatpush1.msra.mxu0 0.0
    %404 = vmatprep.subr.mxu0 0.0
    %405 = vmatpush1.msra.mxu0 0.0
    %406 = vmatprep.subr.mxu0 0.0
    %407 = vmatpush1.msra.mxu0 0.0
    %408 = vmatprep.subr.mxu0 0.0
    %409 = vmatpush1.msra.mxu0 0.0
    %410 = vmatprep.subr.mxu0 0.0
    %411 = vmatpush1.msra.mxu0 0.0
    %412 = vmatprep.subr.mxu0 0.0
    %413 = vmatpush1.msra.mxu0 0.0
    %414 = vmatprep.subr.mxu0 0.0
    %415 = vmatpush1.msra.mxu0 0.0
    %416 = vmatprep.subr.mxu0 0.0
    %417 = vmatpush1.msra.mxu0 0.0
    %418 = vmatprep.subr.mxu0 0.0
    %419 = vmatpush1.msra.mxu0 0.0
    %420 = vmatprep.subr.mxu0 0.0
    %421 = vmatpush1.msra.mxu0 0.0
    %422 = vmatprep.subr.mxu0 0.0
    %423 = vmatpush1.msra.mxu0 0.0
    %424 = vmatprep.subr.mxu0 0.0
    %425 = vmatpush1.msra.mxu0 0.0
    %426 = vmatprep.subr.mxu0 0.0
    %427 = vmatpush1.msra.mxu0 0.0
    %428 = vmatprep.subr.mxu0 0.0
    %429 = vmatpush1.msra.mxu0 0.0
    %430 = vmatprep.subr.mxu0 0.0
    %431 = vmatpush1.msra.mxu0 0.0
    %432 = vmatprep.subr.mxu0 0.0
    %433 = vmatpush1.msra.mxu0 0.0
    %434 = vmatprep.mubr.f32.mxu0 0.0
    %435 = vmatmul.mubr.f32.gmra.mrb[0].mxu0 %v319
    %v436 = vpop.f32.mrb[0].mxu0
    %v437 = vadd.f32 0.0, %v436
    %v438 = vpop.f32.mrb[0].mxu0
    %v439 = vadd.f32 0.0, %v438
    %440 = vmatprep.mubr.f32.mxu0 0.0
    %441 = vmatmul.mubr.f32.gmra.mrb[0].mxu0 %v322
    %v442 = vpop.f32.mrb[0].mxu0
    %v443 = vadd.f32 0.0, %v442
    %v444 = vpop.f32.mrb[0].mxu0
    %v445 = vadd.f32 0.0, %v444
    %446 = vmatprep.mubr.f32.mxu0 0.0
    %447 = vmatmul.mubr.f32.gmra.mrb[0].mxu0 %v325
    %v448 = vpop.f32.mrb[0].mxu0
    %v449 = vadd.f32 0.0, %v448
    %v450 = vpop.f32.mrb[0].mxu0
    %v451 = vadd.f32 0.0, %v450
    %452 = vmatprep.mubr.f32.mxu0 0.0
    %453 = vmatmul.mubr.f32.gmra.mrb[0].mxu0 %v328
    %v454 = vpop.f32.mrb[0].mxu0
    %v455 = vadd.f32 0.0, %v454
    %v456 = vpop.f32.mrb[0].mxu0
    %v457 = vadd.f32 0.0, %v456
    %458 = vmatprep.mubr.f32.mxu0 0.0
    %459 = vmatmul.mubr.f32.gmra.mrb[0].mxu0 %v331
    %v460 = vpop.f32.mrb[0].mxu0
    %v461 = vadd.f32 0.0, %v460
    %v462 = vpop.f32.mrb[0].mxu0
    %v463 = vadd.f32 0.0, %v462
    %464 = vmatprep.mubr.f32.mxu0 0.0
    %465 = vmatmul.mubr.f32.gmra.mrb[0].mxu0 %v334
    %v466 = vpop.f32.mrb[0].mxu0
    %v467 = vadd.f32 0.0, %v466
    %v468 = vpop.f32.mrb[0].mxu0
    %v469 = vadd.f32 0.0, %v468
    %470 = vmatprep.mubr.f32.mxu0 0.0
    %471 = vmatmul.mubr.f32.gmra.mrb[0].mxu0 %v337
    %v472 = vpop.f32.mrb[0].mxu0
    %v473 = vadd.f32 0.0, %v472
    %v474 = vpop.f32.mrb[0].mxu0
    %v475 = vadd.f32 0.0, %v474
    %476 = vmatprep.mubr.f32.mxu0 0.0
    %477 = vmatmul.mubr.f32.gmra.mrb[0].mxu0 %v340
    %v478 = vpop.f32.mrb[0].mxu0
    %v479 = vadd.f32 0.0, %v478
    %v480 = vpop.f32.mrb[0].mxu0
    %v481 = vadd.f32 0.0, %v480
    %482 = vmatprep.mubr.f32.mxu0 0.0
    %483 = vmatmul.mubr.f32.gmra.mrb[0].mxu0 %v343
    %v484 = vpop.f32.mrb[0].mxu0
    %v485 = vadd.f32 0.0, %v484
    %v486 = vpop.f32.mrb[0].mxu0
    %v487 = vadd.f32 0.0, %v486
    %488 = vmatprep.mubr.f32.mxu0 0.0
    %489 = vmatmul.mubr.f32.gmra.mrb[0].mxu0 %v346
    %v490 = vpop.f32.mrb[0].mxu0
    %v491 = vadd.f32 0.0, %v490
    %v492 = vpop.f32.mrb[0].mxu0
    %v493 = vadd.f32 0.0, %v492
    %494 = vmatprep.mubr.f32.mxu0 0.0
    %495 = vmatmul.mubr.f32.gmra.mrb[0].mxu0 %v349
    %v496 = vpop.f32.mrb[0].mxu0
    %v497 = vadd.f32 0.0, %v496
    %v498 = vpop.f32.mrb[0].mxu0
    %v499 = vadd.f32 0.0, %v498
    %500 = vmatprep.mubr.f32.mxu0 0.0
    %501 = vmatmul.mubr.f32.gmra.mrb[0].mxu0 %v352
    %v502 = vpop.f32.mrb[0].mxu0
    %v503 = vadd.f32 0.0, %v502
    %v504 = vpop.f32.mrb[0].mxu0
    %v505 = vadd.f32 0.0, %v504
    %506 = vmatprep.mubr.f32.mxu0 0.0
    %507 = vmatmul.mubr.f32.gmra.mrb[0].mxu0 %v355
    %v508 = vpop.f32.mrb[0].mxu0
    %v509 = vadd.f32 0.0, %v508
    %v510 = vpop.f32.mrb[0].mxu0
    %v511 = vadd.f32 0.0, %v510
    %512 = vmatprep.mubr.f32.mxu0 0.0
    %513 = vmatmul.mubr.f32.gmra.mrb[0].mxu0 %v358
    %v514 = vpop.f32.mrb[0].mxu0
    %v515 = vadd.f32 0.0, %v514
    %v516 = vpop.f32.mrb[0].mxu0
    %v517 = vadd.f32 0.0, %v516
    %518 = vmatprep.mubr.f32.mxu0 0.0
    %519 = vmatmul.mubr.f32.gmra.mrb[0].mxu0 %v361
    %v520 = vpop.f32.mrb[0].mxu0
    %v521 = vadd.f32 0.0, %v520
    %v522 = vpop.f32.mrb[0].mxu0
    %v523 = vadd.f32 0.0, %v522
    %524 = vmatprep.mubr.f32.mxu0 0.0
    %525 = vmatmul.mubr.f32.gmra.mrb[0].mxu0 %v364
    %v526 = vpop.f32.mrb[0].mxu0
    %v527 = vadd.f32 0.0, %v526
    %v528 = vpop.f32.mrb[0].mxu0
    %v529 = vadd.f32 0.0, %v528
    %530 = vdwg.mxu0
    %531 = vmatprep.subr.mxu0 0.0
    %532 = vmatpush1.xpose.msra.mxu0 %v437
    %533 = vmatprep.subr.mxu0 0.0
    %534 = vmatpush1.xpose.msra.mxu0 %v443
    %535 = vmatprep.subr.mxu0 0.0
    %536 = vmatpush1.xpose.msra.mxu0 %v449
    %537 = vmatprep.subr.mxu0 0.0
    %538 = vmatpush1.xpose.msra.mxu0 %v455
    %539 = vmatprep.subr.mxu0 0.0
    %540 = vmatpush1.xpose.msra.mxu0 %v461
    %541 = vmatprep.subr.mxu0 0.0
    %542 = vmatpush1.xpose.msra.mxu0 %v467
    %543 = vmatprep.subr.mxu0 0.0
    %544 = vmatpush1.xpose.msra.mxu0 %v473
    %545 = vmatprep.subr.mxu0 0.0
    %546 = vmatpush1.xpose.msra.mxu0 %v479
    %547 = vmatprep.subr.mxu0 0.0
    %548 = vmatpush1.xpose.msra.mxu0 %v485
    %549 = vmatprep.subr.mxu0 0.0
    %550 = vmatpush1.xpose.msra.mxu0 %v491
    %551 = vmatprep.subr.mxu0 0.0
    %552 = vmatpush1.xpose.msra.mxu0 %v497
    %553 = vmatprep.subr.mxu0 0.0
    %554 = vmatpush1.xpose.msra.mxu0 %v503
    %555 = vmatprep.subr.mxu0 0.0
    %556 = vmatpush1.xpose.msra.mxu0 %v509
    %557 = vmatprep.subr.mxu0 0.0
    %558 = vmatpush1.xpose.msra.mxu0 %v515
    %559 = vmatprep.subr.mxu0 0.0
    %560 = vmatpush1.xpose.msra.mxu0 %v521
    %561 = vmatprep.subr.mxu0 0.0
    %562 = vmatpush1.xpose.msra.mxu0 %v527
    %563 = vmatprep.subr.mxu0 0.0
    %564 = vmatpush1.xpose.msra.mxu0 0.0
    %565 = vmatprep.subr.mxu0 0.0
    %566 = vmatpush1.xpose.msra.mxu0 0.0
    %567 = vmatprep.subr.mxu0 0.0
    %568 = vmatpush1.xpose.msra.mxu0 0.0
    %569 = vmatprep.subr.mxu0 0.0
    %570 = vmatpush1.xpose.msra.mxu0 0.0
    %571 = vmatprep.subr.mxu0 0.0
    %572 = vmatpush1.xpose.msra.mxu0 0.0
    %573 = vmatprep.subr.mxu0 0.0
    %574 = vmatpush1.xpose.msra.mxu0 0.0
    %575 = vmatprep.subr.mxu0 0.0
    %576 = vmatpush1.xpose.msra.mxu0 0.0
    %577 = vmatprep.subr.mxu0 0.0
    %578 = vmatpush1.xpose.msra.mxu0 0.0
    %579 = vmatprep.subr.mxu0 0.0
    %580 = vmatpush1.xpose.msra.mxu0 0.0
    %581 = vmatprep.subr.mxu0 0.0
    %582 = vmatpush1.xpose.msra.mxu0 0.0
    %583 = vmatprep.subr.mxu0 0.0
    %584 = vmatpush1.xpose.msra.mxu0 0.0
    %585 = vmatprep.subr.mxu0 0.0
    %586 = vmatpush1.xpose.msra.mxu0 0.0
    %587 = vmatprep.subr.mxu0 0.0
    %588 = vmatpush1.xpose.msra.mxu0 0.0
    %589 = vmatprep.subr.mxu0 0.0
    %590 = vmatpush1.xpose.msra.mxu0 0.0
    %591 = vmatprep.subr.mxu0 0.0
    %592 = vmatpush1.xpose.msra.mxu0 0.0
    %593 = vmatprep.subr.mxu0 0.0
    %594 = vmatpush1.xpose.msra.mxu0 0.0
    %595 = vmatprep.mubr.f32.mxu0 0.0
    %596 = vmatmul.mubr.f32.gmra.mrb[0].mxu0 %v284
    %v597 = vpop.f32.mrb[0].mxu0
    %v598 = vadd.f32 0.0, %v597
    %v599 = vpop.f32.mrb[0].mxu0
    %600 = vmatprep.mubr.f32.mxu0 0.0
    %601 = vmatmul.mubr.f32.gmra.mrb[0].mxu0 %v285
    %v602 = vpop.f32.mrb[0].mxu0
    %v603 = vadd.f32 0.0, %v602
    %v604 = vpop.f32.mrb[0].mxu0
    %605 = vmatprep.mubr.f32.mxu0 0.0
    %606 = vmatmul.mubr.f32.gmra.mrb[0].mxu0 %v286
    %v607 = vpop.f32.mrb[0].mxu0
    %v608 = vadd.f32 0.0, %v607
    %v609 = vpop.f32.mrb[0].mxu0
    %610 = vmatprep.mubr.f32.mxu0 0.0
    %611 = vmatmul.mubr.f32.gmra.mrb[0].mxu0 %v287
    %v612 = vpop.f32.mrb[0].mxu0
    %v613 = vadd.f32 0.0, %v612
    %v614 = vpop.f32.mrb[0].mxu0
    %615 = vmatprep.mubr.f32.mxu0 0.0
    %616 = vmatmul.mubr.f32.gmra.mrb[0].mxu0 %v288
    %v617 = vpop.f32.mrb[0].mxu0
    %v618 = vadd.f32 0.0, %v617
    %v619 = vpop.f32.mrb[0].mxu0
    %620 = vmatprep.mubr.f32.mxu0 0.0
    %621 = vmatmul.mubr.f32.gmra.mrb[0].mxu0 %v289
    %v622 = vpop.f32.mrb[0].mxu0
    %v623 = vadd.f32 0.0, %v622
    %v624 = vpop.f32.mrb[0].mxu0
    %625 = vmatprep.mubr.f32.mxu0 0.0
    %626 = vmatmul.mubr.f32.gmra.mrb[0].mxu0 %v290
    %v627 = vpop.f32.mrb[0].mxu0
    %v628 = vadd.f32 0.0, %v627
    %v629 = vpop.f32.mrb[0].mxu0
    %630 = vmatprep.mubr.f32.mxu0 0.0
    %631 = vmatmul.mubr.f32.gmra.mrb[0].mxu0 %v291
    %v632 = vpop.f32.mrb[0].mxu0
    %v633 = vadd.f32 0.0, %v632
    %v634 = vpop.f32.mrb[0].mxu0
    %635 = vmatprep.mubr.f32.mxu0 0.0
    %636 = vmatmul.mubr.f32.gmra.mrb[0].mxu0 %v292
    %v637 = vpop.f32.mrb[0].mxu0
    %v638 = vadd.f32 0.0, %v637
    %v639 = vpop.f32.mrb[0].mxu0
    %640 = vmatprep.mubr.f32.mxu0 0.0
    %641 = vmatmul.mubr.f32.gmra.mrb[0].mxu0 %v293
    %v642 = vpop.f32.mrb[0].mxu0
    %v643 = vadd.f32 0.0, %v642
    %v644 = vpop.f32.mrb[0].mxu0
    %645 = vmatprep.mubr.f32.mxu0 0.0
    %646 = vmatmul.mubr.f32.gmra.mrb[0].mxu0 %v294
    %v647 = vpop.f32.mrb[0].mxu0
    %v648 = vadd.f32 0.0, %v647
    %v649 = vpop.f32.mrb[0].mxu0
    %650 = vmatprep.mubr.f32.mxu0 0.0
    %651 = vmatmul.mubr.f32.gmra.mrb[0].mxu0 %v295
    %v652 = vpop.f32.mrb[0].mxu0
    %v653 = vadd.f32 0.0, %v652
    %v654 = vpop.f32.mrb[0].mxu0
    %655 = vmatprep.mubr.f32.mxu0 0.0
    %656 = vmatmul.mubr.f32.gmra.mrb[0].mxu0 %v296
    %v657 = vpop.f32.mrb[0].mxu0
    %v658 = vadd.f32 0.0, %v657
    %v659 = vpop.f32.mrb[0].mxu0
    %660 = vmatprep.mubr.f32.mxu0 0.0
    %661 = vmatmul.mubr.f32.gmra.mrb[0].mxu0 %v297
    %v662 = vpop.f32.mrb[0].mxu0
    %v663 = vadd.f32 0.0, %v662
    %v664 = vpop.f32.mrb[0].mxu0
    %665 = vmatprep.mubr.f32.mxu0 0.0
    %666 = vmatmul.mubr.f32.gmra.mrb[0].mxu0 %v298
    %v667 = vpop.f32.mrb[0].mxu0
    %v668 = vadd.f32 0.0, %v667
    %v669 = vpop.f32.mrb[0].mxu0
    %670 = vmatprep.mubr.f32.mxu0 0.0
    %671 = vmatmul.mubr.f32.gmra.mrb[0].mxu0 %v299
    %v672 = vpop.f32.mrb[0].mxu0
    %v673 = vadd.f32 0.0, %v672
    %v674 = vpop.f32.mrb[0].mxu0
    %675 = vdwg.mxu0
    %s676 = smul.u32 0, 128
    %v677 = vlaneseq
    %v678 = vand.u32 %v677, 127
    %v679 = vstv %s676
    %v680 = vadd.s32 %v679, %v678
    %vm681 = vcmp.lt.s32.totalorder %v680, 6
    %v682 = vsel %vm681, %v598, -inf
    %v683 = vsel %vm681, %v603, -inf
    %v684 = vsel %vm681, %v608, -inf
    %v685 = vsel %vm681, %v613, -inf
    %v686 = vsel %vm681, %v618, -inf
    %v687 = vsel %vm681, %v623, -inf
    %v688 = vsel %vm681, %v628, -inf
    %v689 = vsel %vm681, %v633, -inf
    %v690 = vsel %vm681, %v638, -inf
    %v691 = vsel %vm681, %v643, -inf
    %v692 = vsel %vm681, %v648, -inf
    %v693 = vsel %vm681, %v653, -inf
    %v694 = vsel %vm681, %v658, -inf
    %v695 = vsel %vm681, %v663, -inf
    %v696 = vsel %vm681, %v668, -inf
    %v697 = vsel %vm681, %v673, -inf
    %v698 = vld [vmem:[#allocation2] sm:$0xff]
    %v699 = vld [vmem:[#allocation2 + $0x8] sm:$0xff]
    %v700 = vld [vmem:[#allocation2 + $0x10] sm:$0xff]
    %v701 = vld [vmem:[#allocation2 + $0x18] sm:$0xff]
    %v702 = vld [vmem:[#allocation2 + $0x20] sm:$0xff]
    %v703 = vld [vmem:[#allocation2 + $0x28] sm:$0xff]
    %v704 = vld [vmem:[#allocation2 + $0x30] sm:$0xff]
    %v705 = vld [vmem:[#allocation2 + $0x38] sm:$0xff]
    %v706 = vld [vmem:[#allocation2 + $0x40] sm:$0xff]
    %v707 = vld [vmem:[#allocation2 + $0x48] sm:$0xff]
    %v708 = vld [vmem:[#allocation2 + $0x50] sm:$0xff]
    %v709 = vld [vmem:[#allocation2 + $0x58] sm:$0xff]
    %v710 = vld [vmem:[#allocation2 + $0x60] sm:$0xff]
    %v711 = vld [vmem:[#allocation2 + $0x68] sm:$0xff]
    %v712 = vld [vmem:[#allocation2 + $0x70] sm:$0xff]
    %v713 = vld [vmem:[#allocation2 + $0x78] sm:$0xff]
    %714 = vmax.xlane.f32.xlu0 %v682
    %v715 = vpop.xlane.xlu0 %714
    %716 = vmax.xlane.f32.xlu0 %v683
    %v717 = vpop.xlane.xlu0 %716
    %718 = vmax.xlane.f32.xlu0 %v684
    %v719 = vpop.xlane.xlu0 %718
    %720 = vmax.xlane.f32.xlu0 %v685
    %v721 = vpop.xlane.xlu0 %720
    %722 = vmax.xlane.f32.xlu0 %v686
    %v723 = vpop.xlane.xlu0 %722
    %724 = vmax.xlane.f32.xlu0 %v687
    %v725 = vpop.xlane.xlu0 %724
    %726 = vmax.xlane.f32.xlu0 %v688
    %v727 = vpop.xlane.xlu0 %726
    %728 = vmax.xlane.f32.xlu0 %v689
    %v729 = vpop.xlane.xlu0 %728
    %730 = vmax.xlane.f32.xlu0 %v690
    %v731 = vpop.xlane.xlu0 %730
    %732 = vmax.xlane.f32.xlu0 %v691
    %v733 = vpop.xlane.xlu0 %732
    %734 = vmax.xlane.f32.xlu0 %v692
    %v735 = vpop.xlane.xlu0 %734
    %736 = vmax.xlane.f32.xlu0 %v693
    %v737 = vpop.xlane.xlu0 %736
    %738 = vmax.xlane.f32.xlu0 %v694
    %v739 = vpop.xlane.xlu0 %738
    %740 = vmax.xlane.f32.xlu0 %v695
    %v741 = vpop.xlane.xlu0 %740
    %742 = vmax.xlane.f32.xlu0 %v696
    %v743 = vpop.xlane.xlu0 %742
    %744 = vmax.xlane.f32.xlu0 %v697
    %v745 = vpop.xlane.xlu0 %744
    %v746 = vmax.f32 %v698, %v715
    %v747 = vmax.f32 %v699, %v717
    %v748 = vmax.f32 %v700, %v719
    %v749 = vmax.f32 %v701, %v721
    %v750 = vmax.f32 %v702, %v723
    %v751 = vmax.f32 %v703, %v725
    %v752 = vmax.f32 %v704, %v727
    %v753 = vmax.f32 %v705, %v729
    %v754 = vmax.f32 %v706, %v731
    %v755 = vmax.f32 %v707, %v733
    %v756 = vmax.f32 %v708, %v735
    %v757 = vmax.f32 %v709, %v737
    %v758 = vmax.f32 %v710, %v739
    %v759 = vmax.f32 %v711, %v741
    %v760 = vmax.f32 %v712, %v743
    %v761 = vmax.f32 %v713, %v745
    %v762 = vsub.f32 %v698, %v746
    %v763 = vsub.f32 %v699, %v747
    %v764 = vsub.f32 %v700, %v748
    %v765 = vsub.f32 %v701, %v749
    %v766 = vsub.f32 %v702, %v750
    %v767 = vsub.f32 %v703, %v751
    %v768 = vsub.f32 %v704, %v752
    %v769 = vsub.f32 %v705, %v753
    %v770 = vsub.f32 %v706, %v754
    %v771 = vsub.f32 %v707, %v755
    %v772 = vsub.f32 %v708, %v756
    %v773 = vsub.f32 %v709, %v757
    %v774 = vsub.f32 %v710, %v758
    %v775 = vsub.f32 %v711, %v759
    %v776 = vsub.f32 %v712, %v760
    %v777 = vsub.f32 %v713, %v761
    %v778 = vmul.f32 %v762, 1.442695
    %v779 = vpow.pop %v778
    %v780 = vmul.f32 %v763, 1.442695
    %v781 = vpow.pop %v780
    %v782 = vmul.f32 %v764, 1.442695
    %v783 = vpow.pop %v782
    %v784 = vmul.f32 %v765, 1.442695
    %v785 = vpow.pop %v784
    %v786 = vmul.f32 %v766, 1.442695
    %v787 = vpow.pop %v786
    %v788 = vmul.f32 %v767, 1.442695
    %v789 = vpow.pop %v788
    %v790 = vmul.f32 %v768, 1.442695
    %v791 = vpow.pop %v790
    %v792 = vmul.f32 %v769, 1.442695
    %v793 = vpow.pop %v792
    %v794 = vmul.f32 %v770, 1.442695
    %v795 = vpow.pop %v794
    %v796 = vmul.f32 %v771, 1.442695
    %v797 = vpow.pop %v796
    %v798 = vmul.f32 %v772, 1.442695
    %v799 = vpow.pop %v798
    %v800 = vmul.f32 %v773, 1.442695
    %v801 = vpow.pop %v800
    %v802 = vmul.f32 %v774, 1.442695
    %v803 = vpow.pop %v802
    %v804 = vmul.f32 %v775, 1.442695
    %v805 = vpow.pop %v804
    %v806 = vmul.f32 %v776, 1.442695
    %v807 = vpow.pop %v806
    %v808 = vmul.f32 %v777, 1.442695
    %v809 = vpow.pop %v808
    %811 = vset.pattern.permute.xlu0 0
    %812 = vperm.xlu0 %811, %v746
    %v813 = vpop.permute.xlu0 %812
    %816 = vset.pattern.permute.xlu0 0
    %817 = vperm.xlu0 %816, %v747
    %v818 = vpop.permute.xlu0 %817
    %821 = vset.pattern.permute.xlu0 0
    %822 = vperm.xlu0 %821, %v748
    %v823 = vpop.permute.xlu0 %822
    %826 = vset.pattern.permute.xlu0 0
    %827 = vperm.xlu0 %826, %v749
    %v828 = vpop.permute.xlu0 %827
    %831 = vset.pattern.permute.xlu0 0
    %832 = vperm.xlu0 %831, %v750
    %v833 = vpop.permute.xlu0 %832
    %836 = vset.pattern.permute.xlu0 0
    %837 = vperm.xlu0 %836, %v751
    %v838 = vpop.permute.xlu0 %837
    %841 = vset.pattern.permute.xlu0 0
    %842 = vperm.xlu0 %841, %v752
    %v843 = vpop.permute.xlu0 %842
    %846 = vset.pattern.permute.xlu0 0
    %847 = vperm.xlu0 %846, %v753
    %v848 = vpop.permute.xlu0 %847
    %851 = vset.pattern.permute.xlu0 0
    %852 = vperm.xlu0 %851, %v754
    %v853 = vpop.permute.xlu0 %852
    %856 = vset.pattern.permute.xlu0 0
    %857 = vperm.xlu0 %856, %v755
    %v858 = vpop.permute.xlu0 %857
    %861 = vset.pattern.permute.xlu0 0
    %862 = vperm.xlu0 %861, %v756
    %v863 = vpop.permute.xlu0 %862
    %866 = vset.pattern.permute.xlu0 0
    %867 = vperm.xlu0 %866, %v757
    %v868 = vpop.permute.xlu0 %867
    %871 = vset.pattern.permute.xlu0 0
    %872 = vperm.xlu0 %871, %v758
    %v873 = vpop.permute.xlu0 %872
    %876 = vset.pattern.permute.xlu0 0
    %877 = vperm.xlu0 %876, %v759
    %v878 = vpop.permute.xlu0 %877
    %881 = vset.pattern.permute.xlu0 0
    %882 = vperm.xlu0 %881, %v760
    %v883 = vpop.permute.xlu0 %882
    %886 = vset.pattern.permute.xlu0 0
    %887 = vperm.xlu0 %886, %v761
    %v888 = vpop.permute.xlu0 %887
    %v890 = vsub.f32 %v682, %v813
    %v891 = vsub.f32 %v683, %v818
    %v892 = vsub.f32 %v684, %v823
    %v893 = vsub.f32 %v685, %v828
    %v894 = vsub.f32 %v686, %v833
    %v895 = vsub.f32 %v687, %v838
    %v896 = vsub.f32 %v688, %v843
    %v897 = vsub.f32 %v689, %v848
    %v898 = vsub.f32 %v690, %v853
    %v899 = vsub.f32 %v691, %v858
    %v900 = vsub.f32 %v692, %v863
    %v901 = vsub.f32 %v693, %v868
    %v902 = vsub.f32 %v694, %v873
    %v903 = vsub.f32 %v695, %v878
    %v904 = vsub.f32 %v696, %v883
    %v905 = vsub.f32 %v697, %v888
    %v906 = vmul.f32 %v890, 1.442695
    %v907 = vpow.pop %v906
    %v908 = vmul.f32 %v891, 1.442695
    %v909 = vpow.pop %v908
    %v910 = vmul.f32 %v892, 1.442695
    %v911 = vpow.pop %v910
    %v912 = vmul.f32 %v893, 1.442695
    %v913 = vpow.pop %v912
    %v914 = vmul.f32 %v894, 1.442695
    %v915 = vpow.pop %v914
    %v916 = vmul.f32 %v895, 1.442695
    %v917 = vpow.pop %v916
    %v918 = vmul.f32 %v896, 1.442695
    %v919 = vpow.pop %v918
    %v920 = vmul.f32 %v897, 1.442695
    %v921 = vpow.pop %v920
    %v922 = vmul.f32 %v898, 1.442695
    %v923 = vpow.pop %v922
    %v924 = vmul.f32 %v899, 1.442695
    %v925 = vpow.pop %v924
    %v926 = vmul.f32 %v900, 1.442695
    %v927 = vpow.pop %v926
    %v928 = vmul.f32 %v901, 1.442695
    %v929 = vpow.pop %v928
    %v930 = vmul.f32 %v902, 1.442695
    %v931 = vpow.pop %v930
    %v932 = vmul.f32 %v903, 1.442695
    %v933 = vpow.pop %v932
    %v934 = vmul.f32 %v904, 1.442695
    %v935 = vpow.pop %v934
    %v936 = vmul.f32 %v905, 1.442695
    %v937 = vpow.pop %v936
    %v938 = vld [vmem:[#allocation3] sm:$0xff]
    %v939 = vld [vmem:[#allocation3 + $0x8] sm:$0xff]
    %v940 = vld [vmem:[#allocation3 + $0x10] sm:$0xff]
    %v941 = vld [vmem:[#allocation3 + $0x18] sm:$0xff]
    %v942 = vld [vmem:[#allocation3 + $0x20] sm:$0xff]
    %v943 = vld [vmem:[#allocation3 + $0x28] sm:$0xff]
    %v944 = vld [vmem:[#allocation3 + $0x30] sm:$0xff]
    %v945 = vld [vmem:[#allocation3 + $0x38] sm:$0xff]
    %v946 = vld [vmem:[#allocation3 + $0x40] sm:$0xff]
    %v947 = vld [vmem:[#allocation3 + $0x48] sm:$0xff]
    %v948 = vld [vmem:[#allocation3 + $0x50] sm:$0xff]
    %v949 = vld [vmem:[#allocation3 + $0x58] sm:$0xff]
    %v950 = vld [vmem:[#allocation3 + $0x60] sm:$0xff]
    %v951 = vld [vmem:[#allocation3 + $0x68] sm:$0xff]
    %v952 = vld [vmem:[#allocation3 + $0x70] sm:$0xff]
    %v953 = vld [vmem:[#allocation3 + $0x78] sm:$0xff]
    %v954 = vmul.f32 %v779, %v938
    %v955 = vmul.f32 %v781, %v939
    %v956 = vmul.f32 %v783, %v940
    %v957 = vmul.f32 %v785, %v941
    %v958 = vmul.f32 %v787, %v942
    %v959 = vmul.f32 %v789, %v943
    %v960 = vmul.f32 %v791, %v944
    %v961 = vmul.f32 %v793, %v945
    %v962 = vmul.f32 %v795, %v946
    %v963 = vmul.f32 %v797, %v947
    %v964 = vmul.f32 %v799, %v948
    %v965 = vmul.f32 %v801, %v949
    %v966 = vmul.f32 %v803, %v950
    %v967 = vmul.f32 %v805, %v951
    %v968 = vmul.f32 %v807, %v952
    %v969 = vmul.f32 %v809, %v953
    %970 = vadd.xlane.f32.xlu0 %v907
    %v971 = vpop.xlane.xlu0 %970
    %972 = vadd.xlane.f32.xlu0 %v909
    %v973 = vpop.xlane.xlu0 %972
    %974 = vadd.xlane.f32.xlu0 %v911
    %v975 = vpop.xlane.xlu0 %974
    %976 = vadd.xlane.f32.xlu0 %v913
    %v977 = vpop.xlane.xlu0 %976
    %978 = vadd.xlane.f32.xlu0 %v915
    %v979 = vpop.xlane.xlu0 %978
    %980 = vadd.xlane.f32.xlu0 %v917
    %v981 = vpop.xlane.xlu0 %980
    %982 = vadd.xlane.f32.xlu0 %v919
    %v983 = vpop.xlane.xlu0 %982
    %984 = vadd.xlane.f32.xlu0 %v921
    %v985 = vpop.xlane.xlu0 %984
    %986 = vadd.xlane.f32.xlu0 %v923
    %v987 = vpop.xlane.xlu0 %986
    %988 = vadd.xlane.f32.xlu0 %v925
    %v989 = vpop.xlane.xlu0 %988
    %990 = vadd.xlane.f32.xlu0 %v927
    %v991 = vpop.xlane.xlu0 %990
    %992 = vadd.xlane.f32.xlu0 %v929
    %v993 = vpop.xlane.xlu0 %992
    %994 = vadd.xlane.f32.xlu0 %v931
    %v995 = vpop.xlane.xlu0 %994
    %996 = vadd.xlane.f32.xlu0 %v933
    %v997 = vpop.xlane.xlu0 %996
    %998 = vadd.xlane.f32.xlu0 %v935
    %v999 = vpop.xlane.xlu0 %998
    %1000 = vadd.xlane.f32.xlu0 %v937
    %v1001 = vpop.xlane.xlu0 %1000
    %v1002 = vadd.f32 %v954, %v971
    %v1003 = vadd.f32 %v955, %v973
    %v1004 = vadd.f32 %v956, %v975
    %v1005 = vadd.f32 %v957, %v977
    %v1006 = vadd.f32 %v958, %v979
    %v1007 = vadd.f32 %v959, %v981
    %v1008 = vadd.f32 %v960, %v983
    %v1009 = vadd.f32 %v961, %v985
    %v1010 = vadd.f32 %v962, %v987
    %v1011 = vadd.f32 %v963, %v989
    %v1012 = vadd.f32 %v964, %v991
    %v1013 = vadd.f32 %v965, %v993
    %v1014 = vadd.f32 %v966, %v995
    %v1015 = vadd.f32 %v967, %v997
    %v1016 = vadd.f32 %v968, %v999
    %v1017 = vadd.f32 %v969, %v1001
    %vm1018 = vcmask 7168
    %1019 = vst.msk [vmem:[#allocation3] sm:$0xff] %vm1018, %v1002
    %1020 = vst.msk [vmem:[#allocation3 + $0x8] sm:$0xff] %vm1018, %v1003
    %1021 = vst.msk [vmem:[#allocation3 + $0x10] sm:$0xff] %vm1018, %v1004
    %1022 = vst.msk [vmem:[#allocation3 + $0x18] sm:$0xff] %vm1018, %v1005
    %1023 = vst.msk [vmem:[#allocation3 + $0x20] sm:$0xff] %vm1018, %v1006
    %1024 = vst.msk [vmem:[#allocation3 + $0x28] sm:$0xff] %vm1018, %v1007
    %1025 = vst.msk [vmem:[#allocation3 + $0x30] sm:$0xff] %vm1018, %v1008
    %1026 = vst.msk [vmem:[#allocation3 + $0x38] sm:$0xff] %vm1018, %v1009
    %1027 = vst.msk [vmem:[#allocation3 + $0x40] sm:$0xff] %vm1018, %v1010
    %1028 = vst.msk [vmem:[#allocation3 + $0x48] sm:$0xff] %vm1018, %v1011
    %1029 = vst.msk [vmem:[#allocation3 + $0x50] sm:$0xff] %vm1018, %v1012
    %1030 = vst.msk [vmem:[#allocation3 + $0x58] sm:$0xff] %vm1018, %v1013
    %1031 = vst.msk [vmem:[#allocation3 + $0x60] sm:$0xff] %vm1018, %v1014
    %1032 = vst.msk [vmem:[#allocation3 + $0x68] sm:$0xff] %vm1018, %v1015
    %1033 = vst.msk [vmem:[#allocation3 + $0x70] sm:$0xff] %vm1018, %v1016
    %1034 = vst.msk [vmem:[#allocation3 + $0x78] sm:$0xff] %vm1018, %v1017
    %v1035 = vld [vmem:[#allocation4] sm:$0xff]
    %v1036 = vld [vmem:[#allocation4 + $0x8] sm:$0xff]
    %v1037 = vld [vmem:[#allocation4 + $0x10] sm:$0xff]
    %v1038 = vld [vmem:[#allocation4 + $0x18] sm:$0xff]
    %v1039 = vld [vmem:[#allocation4 + $0x20] sm:$0xff]
    %v1040 = vld [vmem:[#allocation4 + $0x28] sm:$0xff]
    %v1041 = vld [vmem:[#allocation4 + $0x30] sm:$0xff]
    %v1042 = vld [vmem:[#allocation4 + $0x38] sm:$0xff]
    %v1043 = vld [vmem:[#allocation4 + $0x40] sm:$0xff]
    %v1044 = vld [vmem:[#allocation4 + $0x48] sm:$0xff]
    %v1045 = vld [vmem:[#allocation4 + $0x50] sm:$0xff]
    %v1046 = vld [vmem:[#allocation4 + $0x58] sm:$0xff]
    %v1047 = vld [vmem:[#allocation4 + $0x60] sm:$0xff]
    %v1048 = vld [vmem:[#allocation4 + $0x68] sm:$0xff]
    %v1049 = vld [vmem:[#allocation4 + $0x70] sm:$0xff]
    %v1050 = vld [vmem:[#allocation4 + $0x78] sm:$0xff]
    %1052 = vset.pattern.permute.xlu0 0
    %1053 = vperm.xlu0 %1052, %v779
    %v1054 = vpop.permute.xlu0 %1053
    %1057 = vset.pattern.permute.xlu0 0
    %1058 = vperm.xlu0 %1057, %v781
    %v1059 = vpop.permute.xlu0 %1058
    %1062 = vset.pattern.permute.xlu0 0
    %1063 = vperm.xlu0 %1062, %v783
    %v1064 = vpop.permute.xlu0 %1063
    %1067 = vset.pattern.permute.xlu0 0
    %1068 = vperm.xlu0 %1067, %v785
    %v1069 = vpop.permute.xlu0 %1068
    %1072 = vset.pattern.permute.xlu0 0
    %1073 = vperm.xlu0 %1072, %v787
    %v1074 = vpop.permute.xlu0 %1073
    %1077 = vset.pattern.permute.xlu0 0
    %1078 = vperm.xlu0 %1077, %v789
    %v1079 = vpop.permute.xlu0 %1078
    %1082 = vset.pattern.permute.xlu0 0
    %1083 = vperm.xlu0 %1082, %v791
    %v1084 = vpop.permute.xlu0 %1083
    %1087 = vset.pattern.permute.xlu0 0
    %1088 = vperm.xlu0 %1087, %v793
    %v1089 = vpop.permute.xlu0 %1088
    %1092 = vset.pattern.permute.xlu0 0
    %1093 = vperm.xlu0 %1092, %v795
    %v1094 = vpop.permute.xlu0 %1093
    %1097 = vset.pattern.permute.xlu0 0
    %1098 = vperm.xlu0 %1097, %v797
    %v1099 = vpop.permute.xlu0 %1098
    %1102 = vset.pattern.permute.xlu0 0
    %1103 = vperm.xlu0 %1102, %v799
    %v1104 = vpop.permute.xlu0 %1103
    %1107 = vset.pattern.permute.xlu0 0
    %1108 = vperm.xlu0 %1107, %v801
    %v1109 = vpop.permute.xlu0 %1108
    %1112 = vset.pattern.permute.xlu0 0
    %1113 = vperm.xlu0 %1112, %v803
    %v1114 = vpop.permute.xlu0 %1113
    %1117 = vset.pattern.permute.xlu0 0
    %1118 = vperm.xlu0 %1117, %v805
    %v1119 = vpop.permute.xlu0 %1118
    %1122 = vset.pattern.permute.xlu0 0
    %1123 = vperm.xlu0 %1122, %v807
    %v1124 = vpop.permute.xlu0 %1123
    %1127 = vset.pattern.permute.xlu0 0
    %1128 = vperm.xlu0 %1127, %v809
    %v1129 = vpop.permute.xlu0 %1128
    %v1131 = vmul.f32 %v1054, %v1035
    %v1132 = vmul.f32 %v1059, %v1036
    %v1133 = vmul.f32 %v1064, %v1037
    %v1134 = vmul.f32 %v1069, %v1038
    %v1135 = vmul.f32 %v1074, %v1039
    %v1136 = vmul.f32 %v1079, %v1040
    %v1137 = vmul.f32 %v1084, %v1041
    %v1138 = vmul.f32 %v1089, %v1042
    %v1139 = vmul.f32 %v1094, %v1043
    %v1140 = vmul.f32 %v1099, %v1044
    %v1141 = vmul.f32 %v1104, %v1045
    %v1142 = vmul.f32 %v1109, %v1046
    %v1143 = vmul.f32 %v1114, %v1047
    %v1144 = vmul.f32 %v1119, %v1048
    %v1145 = vmul.f32 %v1124, %v1049
    %v1146 = vmul.f32 %v1129, %v1050
    %1147 = vmatprep.subr.mxu0 0.0
    %1148 = vmatpush1.msra.mxu0 %v439
    %1149 = vmatprep.subr.mxu0 0.0
    %1150 = vmatpush1.msra.mxu0 %v445
    %1151 = vmatprep.subr.mxu0 0.0
    %1152 = vmatpush1.msra.mxu0 %v451
    %1153 = vmatprep.subr.mxu0 0.0
    %1154 = vmatpush1.msra.mxu0 %v457
    %1155 = vmatprep.subr.mxu0 0.0
    %1156 = vmatpush1.msra.mxu0 %v463
    %1157 = vmatprep.subr.mxu0 0.0
    %1158 = vmatpush1.msra.mxu0 %v469
    %1159 = vmatprep.subr.mxu0 0.0
    %1160 = vmatpush1.msra.mxu0 %v475
    %1161 = vmatprep.subr.mxu0 0.0
    %1162 = vmatpush1.msra.mxu0 %v481
    %1163 = vmatprep.subr.mxu0 0.0
    %1164 = vmatpush1.msra.mxu0 %v487
    %1165 = vmatprep.subr.mxu0 0.0
    %1166 = vmatpush1.msra.mxu0 %v493
    %1167 = vmatprep.subr.mxu0 0.0
    %1168 = vmatpush1.msra.mxu0 %v499
    %1169 = vmatprep.subr.mxu0 0.0
    %1170 = vmatpush1.msra.mxu0 %v505
    %1171 = vmatprep.subr.mxu0 0.0
    %1172 = vmatpush1.msra.mxu0 %v511
    %1173 = vmatprep.subr.mxu0 0.0
    %1174 = vmatpush1.msra.mxu0 %v517
    %1175 = vmatprep.subr.mxu0 0.0
    %1176 = vmatpush1.msra.mxu0 %v523
    %1177 = vmatprep.subr.mxu0 0.0
    %1178 = vmatpush1.msra.mxu0 %v529
    %1179 = vmatprep.subr.mxu0 0.0
    %1180 = vmatpush1.msra.mxu0 0.0
    %1181 = vmatprep.subr.mxu0 0.0
    %1182 = vmatpush1.msra.mxu0 0.0
    %1183 = vmatprep.subr.mxu0 0.0
    %1184 = vmatpush1.msra.mxu0 0.0
    %1185 = vmatprep.subr.mxu0 0.0
    %1186 = vmatpush1.msra.mxu0 0.0
    %1187 = vmatprep.subr.mxu0 0.0
    %1188 = vmatpush1.msra.mxu0 0.0
    %1189 = vmatprep.subr.mxu0 0.0
    %1190 = vmatpush1.msra.mxu0 0.0
    %1191 = vmatprep.subr.mxu0 0.0
    %1192 = vmatpush1.msra.mxu0 0.0
    %1193 = vmatprep.subr.mxu0 0.0
    %1194 = vmatpush1.msra.mxu0 0.0
    %1195 = vmatprep.subr.mxu0 0.0
    %1196 = vmatpush1.msra.mxu0 0.0
    %1197 = vmatprep.subr.mxu0 0.0
    %1198 = vmatpush1.msra.mxu0 0.0
    %1199 = vmatprep.subr.mxu0 0.0
    %1200 = vmatpush1.msra.mxu0 0.0
    %1201 = vmatprep.subr.mxu0 0.0
    %1202 = vmatpush1.msra.mxu0 0.0
    %1203 = vmatprep.subr.mxu0 0.0
    %1204 = vmatpush1.msra.mxu0 0.0
    %1205 = vmatprep.subr.mxu0 0.0
    %1206 = vmatpush1.msra.mxu0 0.0
    %1207 = vmatprep.subr.mxu0 0.0
    %1208 = vmatpush1.msra.mxu0 0.0
    %1209 = vmatprep.subr.mxu0 0.0
    %1210 = vmatpush1.msra.mxu0 0.0
    %1211 = vmatprep.mubr.f32.mxu0 0.0
    %1212 = vmatmul.mubr.f32.gmra.mrb[0].mxu0 %v907
    %v1213 = vpop.f32.mrb[0].mxu0
    %v1214 = vadd.f32 0.0, %v1213
    %v1215 = vpop.f32.mrb[0].mxu0
    %1216 = vmatprep.mubr.f32.mxu0 0.0
    %1217 = vmatmul.mubr.f32.gmra.mrb[0].mxu0 %v909
    %v1218 = vpop.f32.mrb[0].mxu0
    %v1219 = vadd.f32 0.0, %v1218
    %v1220 = vpop.f32.mrb[0].mxu0
    %1221 = vmatprep.mubr.f32.mxu0 0.0
    %1222 = vmatmul.mubr.f32.gmra.mrb[0].mxu0 %v911
    %v1223 = vpop.f32.mrb[0].mxu0
    %v1224 = vadd.f32 0.0, %v1223
    %v1225 = vpop.f32.mrb[0].mxu0
    %1226 = vmatprep.mubr.f32.mxu0 0.0
    %1227 = vmatmul.mubr.f32.gmra.mrb[0].mxu0 %v913
    %v1228 = vpop.f32.mrb[0].mxu0
    %v1229 = vadd.f32 0.0, %v1228
    %v1230 = vpop.f32.mrb[0].mxu0
    %1231 = vmatprep.mubr.f32.mxu0 0.0
    %1232 = vmatmul.mubr.f32.gmra.mrb[0].mxu0 %v915
    %v1233 = vpop.f32.mrb[0].mxu0
    %v1234 = vadd.f32 0.0, %v1233
    %v1235 = vpop.f32.mrb[0].mxu0
    %1236 = vmatprep.mubr.f32.mxu0 0.0
    %1237 = vmatmul.mubr.f32.gmra.mrb[0].mxu0 %v917
    %v1238 = vpop.f32.mrb[0].mxu0
    %v1239 = vadd.f32 0.0, %v1238
    %v1240 = vpop.f32.mrb[0].mxu0
    %1241 = vmatprep.mubr.f32.mxu0 0.0
    %1242 = vmatmul.mubr.f32.gmra.mrb[0].mxu0 %v919
    %v1243 = vpop.f32.mrb[0].mxu0
    %v1244 = vadd.f32 0.0, %v1243
    %v1245 = vpop.f32.mrb[0].mxu0
    %1246 = vmatprep.mubr.f32.mxu0 0.0
    %1247 = vmatmul.mubr.f32.gmra.mrb[0].mxu0 %v921
    %v1248 = vpop.f32.mrb[0].mxu0
    %v1249 = vadd.f32 0.0, %v1248
    %v1250 = vpop.f32.mrb[0].mxu0
    %1251 = vmatprep.mubr.f32.mxu0 0.0
    %1252 = vmatmul.mubr.f32.gmra.mrb[0].mxu0 %v923
    %v1253 = vpop.f32.mrb[0].mxu0
    %v1254 = vadd.f32 0.0, %v1253
    %v1255 = vpop.f32.mrb[0].mxu0
    %1256 = vmatprep.mubr.f32.mxu0 0.0
    %1257 = vmatmul.mubr.f32.gmra.mrb[0].mxu0 %v925
    %v1258 = vpop.f32.mrb[0].mxu0
    %v1259 = vadd.f32 0.0, %v1258
    %v1260 = vpop.f32.mrb[0].mxu0
    %1261 = vmatprep.mubr.f32.mxu0 0.0
    %1262 = vmatmul.mubr.f32.gmra.mrb[0].mxu0 %v927
    %v1263 = vpop.f32.mrb[0].mxu0
    %v1264 = vadd.f32 0.0, %v1263
    %v1265 = vpop.f32.mrb[0].mxu0
    %1266 = vmatprep.mubr.f32.mxu0 0.0
    %1267 = vmatmul.mubr.f32.gmra.mrb[0].mxu0 %v929
    %v1268 = vpop.f32.mrb[0].mxu0
    %v1269 = vadd.f32 0.0, %v1268
    %v1270 = vpop.f32.mrb[0].mxu0
    %1271 = vmatprep.mubr.f32.mxu0 0.0
    %1272 = vmatmul.mubr.f32.gmra.mrb[0].mxu0 %v931
    %v1273 = vpop.f32.mrb[0].mxu0
    %v1274 = vadd.f32 0.0, %v1273
    %v1275 = vpop.f32.mrb[0].mxu0
    %1276 = vmatprep.mubr.f32.mxu0 0.0
    %1277 = vmatmul.mubr.f32.gmra.mrb[0].mxu0 %v933
    %v1278 = vpop.f32.mrb[0].mxu0
    %v1279 = vadd.f32 0.0, %v1278
    %v1280 = vpop.f32.mrb[0].mxu0
    %1281 = vmatprep.mubr.f32.mxu0 0.0
    %1282 = vmatmul.mubr.f32.gmra.mrb[0].mxu0 %v935
    %v1283 = vpop.f32.mrb[0].mxu0
    %v1284 = vadd.f32 0.0, %v1283
    %v1285 = vpop.f32.mrb[0].mxu0
    %1286 = vmatprep.mubr.f32.mxu0 0.0
    %1287 = vmatmul.mubr.f32.gmra.mrb[0].mxu0 %v937
    %v1288 = vpop.f32.mrb[0].mxu0
    %v1289 = vadd.f32 0.0, %v1288
    %v1290 = vpop.f32.mrb[0].mxu0
    %1291 = vdwg.mxu0
    %v1292 = vadd.f32 %v1131, %v1214
    %v1293 = vadd.f32 %v1132, %v1219
    %v1294 = vadd.f32 %v1133, %v1224
    %v1295 = vadd.f32 %v1134, %v1229
    %v1296 = vadd.f32 %v1135, %v1234
    %v1297 = vadd.f32 %v1136, %v1239
    %v1298 = vadd.f32 %v1137, %v1244
    %v1299 = vadd.f32 %v1138, %v1249
    %v1300 = vadd.f32 %v1139, %v1254
    %v1301 = vadd.f32 %v1140, %v1259
    %v1302 = vadd.f32 %v1141, %v1264
    %v1303 = vadd.f32 %v1142, %v1269
    %v1304 = vadd.f32 %v1143, %v1274
    %v1305 = vadd.f32 %v1144, %v1279
    %v1306 = vadd.f32 %v1145, %v1284
    %v1307 = vadd.f32 %v1146, %v1289
    %1308 = vst [vmem:[#allocation4] sm:$0xff] %v1292
    %1309 = vst [vmem:[#allocation4 + $0x8] sm:$0xff] %v1293
    %1310 = vst [vmem:[#allocation4 + $0x10] sm:$0xff] %v1294
    %1311 = vst [vmem:[#allocation4 + $0x18] sm:$0xff] %v1295
    %1312 = vst [vmem:[#allocation4 + $0x20] sm:$0xff] %v1296
    %1313 = vst [vmem:[#allocation4 + $0x28] sm:$0xff] %v1297
    %1314 = vst [vmem:[#allocation4 + $0x30] sm:$0xff] %v1298
    %1315 = vst [vmem:[#allocation4 + $0x38] sm:$0xff] %v1299
    %1316 = vst [vmem:[#allocation4 + $0x40] sm:$0xff] %v1300
    %1317 = vst [vmem:[#allocation4 + $0x48] sm:$0xff] %v1301
    %1318 = vst [vmem:[#allocation4 + $0x50] sm:$0xff] %v1302
    %1319 = vst [vmem:[#allocation4 + $0x58] sm:$0xff] %v1303
    %1320 = vst [vmem:[#allocation4 + $0x60] sm:$0xff] %v1304
    %1321 = vst [vmem:[#allocation4 + $0x68] sm:$0xff] %v1305
    %1322 = vst [vmem:[#allocation4 + $0x70] sm:$0xff] %v1306
    %1323 = vst [vmem:[#allocation4 + $0x78] sm:$0xff] %v1307
    %1324 = vst.msk [vmem:[#allocation2] sm:$0xff] %vm1018, %v746
    %1325 = vst.msk [vmem:[#allocation2 + $0x8] sm:$0xff] %vm1018, %v747
    %1326 = vst.msk [vmem:[#allocation2 + $0x10] sm:$0xff] %vm1018, %v748
    %1327 = vst.msk [vmem:[#allocation2 + $0x18] sm:$0xff] %vm1018, %v749
    %1328 = vst.msk [vmem:[#allocation2 + $0x20] sm:$0xff] %vm1018, %v750
    %1329 = vst.msk [vmem:[#allocation2 + $0x28] sm:$0xff] %vm1018, %v751
    %1330 = vst.msk [vmem:[#allocation2 + $0x30] sm:$0xff] %vm1018, %v752
    %1331 = vst.msk [vmem:[#allocation2 + $0x38] sm:$0xff] %vm1018, %v753
    %1332 = vst.msk [vmem:[#allocation2 + $0x40] sm:$0xff] %vm1018, %v754
    %1333 = vst.msk [vmem:[#allocation2 + $0x48] sm:$0xff] %vm1018, %v755
    %1334 = vst.msk [vmem:[#allocation2 + $0x50] sm:$0xff] %vm1018, %v756
    %1335 = vst.msk [vmem:[#allocation2 + $0x58] sm:$0xff] %vm1018, %v757
    %1336 = vst.msk [vmem:[#allocation2 + $0x60] sm:$0xff] %vm1018, %v758
    %1337 = vst.msk [vmem:[#allocation2 + $0x68] sm:$0xff] %vm1018, %v759
    %1338 = vst.msk [vmem:[#allocation2 + $0x70] sm:$0xff] %vm1018, %v760
    %1339 = vst.msk [vmem:[#allocation2 + $0x78] sm:$0xff] %vm1018, %v761
    // Predicated region
    $region18: #{tpu_custom_call.1} parent=1 // pred_check
      %p1340 = pneg %p15
    $region19: #{tpu_custom_call.1} parent=1 // pred_check_branch
      %1342 = sbr.rel (%p1340) target = $region21
    $region20: #{tpu_custom_call.1} parent=1 // pred_region
      %v1343 = vld [vmem:[#allocation3] sm:$0xff]
      %v1344 = vld [vmem:[#allocation3 + $0x8] sm:$0xff]
      %v1345 = vld [vmem:[#allocation3 + $0x10] sm:$0xff]
      %v1346 = vld [vmem:[#allocation3 + $0x18] sm:$0xff]
      %v1347 = vld [vmem:[#allocation3 + $0x20] sm:$0xff]
      %v1348 = vld [vmem:[#allocation3 + $0x28] sm:$0xff]
      %v1349 = vld [vmem:[#allocation3 + $0x30] sm:$0xff]
      %v1350 = vld [vmem:[#allocation3 + $0x38] sm:$0xff]
      %v1351 = vld [vmem:[#allocation3 + $0x40] sm:$0xff]
      %v1352 = vld [vmem:[#allocation3 + $0x48] sm:$0xff]
      %v1353 = vld [vmem:[#allocation3 + $0x50] sm:$0xff]
      %v1354 = vld [vmem:[#allocation3 + $0x58] sm:$0xff]
      %v1355 = vld [vmem:[#allocation3 + $0x60] sm:$0xff]
      %v1356 = vld [vmem:[#allocation3 + $0x68] sm:$0xff]
      %v1357 = vld [vmem:[#allocation3 + $0x70] sm:$0xff]
      %v1358 = vld [vmem:[#allocation3 + $0x78] sm:$0xff]
      %v1359 = vrcp.pop %v1343
      %v1360 = vrcp.pop %v1344
      %v1361 = vrcp.pop %v1345
      %v1362 = vrcp.pop %v1346
      %v1363 = vrcp.pop %v1347
      %v1364 = vrcp.pop %v1348
      %v1365 = vrcp.pop %v1349
      %v1366 = vrcp.pop %v1350
      %v1367 = vrcp.pop %v1351
      %v1368 = vrcp.pop %v1352
      %v1369 = vrcp.pop %v1353
      %v1370 = vrcp.pop %v1354
      %v1371 = vrcp.pop %v1355
      %v1372 = vrcp.pop %v1356
      %v1373 = vrcp.pop %v1357
      %v1374 = vrcp.pop %v1358
      %v1375 = vld [vmem:[#allocation4] sm:$0xff]
      %v1376 = vld [vmem:[#allocation4 + $0x8] sm:$0xff]
      %v1377 = vld [vmem:[#allocation4 + $0x10] sm:$0xff]
      %v1378 = vld [vmem:[#allocation4 + $0x18] sm:$0xff]
      %v1379 = vld [vmem:[#allocation4 + $0x20] sm:$0xff]
      %v1380 = vld [vmem:[#allocation4 + $0x28] sm:$0xff]
      %v1381 = vld [vmem:[#allocation4 + $0x30] sm:$0xff]
      %v1382 = vld [vmem:[#allocation4 + $0x38] sm:$0xff]
      %v1383 = vld [vmem:[#allocation4 + $0x40] sm:$0xff]
      %v1384 = vld [vmem:[#allocation4 + $0x48] sm:$0xff]
      %v1385 = vld [vmem:[#allocation4 + $0x50] sm:$0xff]
      %v1386 = vld [vmem:[#allocation4 + $0x58] sm:$0xff]
      %v1387 = vld [vmem:[#allocation4 + $0x60] sm:$0xff]
      %v1388 = vld [vmem:[#allocation4 + $0x68] sm:$0xff]
      %v1389 = vld [vmem:[#allocation4 + $0x70] sm:$0xff]
      %v1390 = vld [vmem:[#allocation4 + $0x78] sm:$0xff]
      %1392 = vset.pattern.permute.xlu0 0
      %1393 = vperm.xlu0 %1392, %v1359
      %v1394 = vpop.permute.xlu0 %1393
      %1397 = vset.pattern.permute.xlu0 0
      %1398 = vperm.xlu0 %1397, %v1360
      %v1399 = vpop.permute.xlu0 %1398
      %1402 = vset.pattern.permute.xlu0 0
      %1403 = vperm.xlu0 %1402, %v1361
      %v1404 = vpop.permute.xlu0 %1403
      %1407 = vset.pattern.permute.xlu0 0
      %1408 = vperm.xlu0 %1407, %v1362
      %v1409 = vpop.permute.xlu0 %1408
      %1412 = vset.pattern.permute.xlu0 0
      %1413 = vperm.xlu0 %1412, %v1363
      %v1414 = vpop.permute.xlu0 %1413
      %1417 = vset.pattern.permute.xlu0 0
      %1418 = vperm.xlu0 %1417, %v1364
      %v1419 = vpop.permute.xlu0 %1418
      %1422 = vset.pattern.permute.xlu0 0
      %1423 = vperm.xlu0 %1422, %v1365
      %v1424 = vpop.permute.xlu0 %1423
      %1427 = vset.pattern.permute.xlu0 0
      %1428 = vperm.xlu0 %1427, %v1366
      %v1429 = vpop.permute.xlu0 %1428
      %1432 = vset.pattern.permute.xlu0 0
      %1433 = vperm.xlu0 %1432, %v1367
      %v1434 = vpop.permute.xlu0 %1433
      %1437 = vset.pattern.permute.xlu0 0
      %1438 = vperm.xlu0 %1437, %v1368
      %v1439 = vpop.permute.xlu0 %1438
      %1442 = vset.pattern.permute.xlu0 0
      %1443 = vperm.xlu0 %1442, %v1369
      %v1444 = vpop.permute.xlu0 %1443
      %1447 = vset.pattern.permute.xlu0 0
      %1448 = vperm.xlu0 %1447, %v1370
      %v1449 = vpop.permute.xlu0 %1448
      %1452 = vset.pattern.permute.xlu0 0
      %1453 = vperm.xlu0 %1452, %v1371
      %v1454 = vpop.permute.xlu0 %1453
      %1457 = vset.pattern.permute.xlu0 0
      %1458 = vperm.xlu0 %1457, %v1372
      %v1459 = vpop.permute.xlu0 %1458
      %1462 = vset.pattern.permute.xlu0 0
      %1463 = vperm.xlu0 %1462, %v1373
      %v1464 = vpop.permute.xlu0 %1463
      %1467 = vset.pattern.permute.xlu0 0
      %1468 = vperm.xlu0 %1467, %v1374
      %v1469 = vpop.permute.xlu0 %1468
      %v1471 = vmul.f32 %v1375, %v1394
      %v1472 = vmul.f32 %v1376, %v1399
      %v1473 = vmul.f32 %v1377, %v1404
      %v1474 = vmul.f32 %v1378, %v1409
      %v1475 = vmul.f32 %v1379, %v1414
      %v1476 = vmul.f32 %v1380, %v1419
      %v1477 = vmul.f32 %v1381, %v1424
      %v1478 = vmul.f32 %v1382, %v1429
      %v1479 = vmul.f32 %v1383, %v1434
      %v1480 = vmul.f32 %v1384, %v1439
      %v1481 = vmul.f32 %v1385, %v1444
      %v1482 = vmul.f32 %v1386, %v1449
      %v1483 = vmul.f32 %v1387, %v1454
      %v1484 = vmul.f32 %v1388, %v1459
      %v1485 = vmul.f32 %v1389, %v1464
      %v1486 = vmul.f32 %v1390, %v1469
      %1487 = vst [vmem:[#allocation5] sm:$0xff] %v1471
      %1488 = vst [vmem:[#allocation5 + $0x8] sm:$0xff] %v1472
      %1489 = vst [vmem:[#allocation5 + $0x10] sm:$0xff] %v1473
      %1490 = vst [vmem:[#allocation5 + $0x18] sm:$0xff] %v1474
      %1491 = vst [vmem:[#allocation5 + $0x20] sm:$0xff] %v1475
      %1492 = vst [vmem:[#allocation5 + $0x28] sm:$0xff] %v1476
      %1493 = vst [vmem:[#allocation5 + $0x30] sm:$0xff] %v1477
      %1494 = vst [vmem:[#allocation5 + $0x38] sm:$0xff] %v1478
      %1495 = vst [vmem:[#allocation5 + $0x40] sm:$0xff] %v1479
      %1496 = vst [vmem:[#allocation5 + $0x48] sm:$0xff] %v1480
      %1497 = vst [vmem:[#allocation5 + $0x50] sm:$0xff] %v1481
      %1498 = vst [vmem:[#allocation5 + $0x58] sm:$0xff] %v1482
      %1499 = vst [vmem:[#allocation5 + $0x60] sm:$0xff] %v1483
      %1500 = vst [vmem:[#allocation5 + $0x68] sm:$0xff] %v1484
      %1501 = vst [vmem:[#allocation5 + $0x70] sm:$0xff] %v1485
      %1502 = vst [vmem:[#allocation5 + $0x78] sm:$0xff] %v1486
    $region21: #{tpu_custom_call.1} parent=1 // pred_fallthru
      _
    // Predicated region
    $region22: #{tpu_custom_call.1} parent=1 // pred_check
      _
    $region23: #{tpu_custom_call.1} parent=1 // pred_check_branch
      %1504 = sbr.rel (0) target = $region25
    $region24: #{tpu_custom_call.1} parent=1 // pred_region
      %s1506 = ssub.s32 2048, 2048
      %1507 = vsyncadd [#allocation6], %s1506
      %s1508 = sshll.u32 [#allocation5], 4
      %s1509 = int_to_ptr.vmem [resolvable:$true] %s1508
      %1514 = dma.vmem_to_hbm [thread:$0]  %s1509, 2048, %s3, [#allocation6], 128, 128, 8
    $region25: #{tpu_custom_call.1} parent=1 // pred_fallthru
      _
    // Predicated region
    $region26: #{tpu_custom_call.1} parent=1 // pred_check
      _
    $region27: #{tpu_custom_call.1} parent=1 // pred_check_branch
      %1516 = sbr.rel (0) target = $region29
    $region28: #{tpu_custom_call.1} parent=1 // pred_region
      %1517 = dma.done [#allocation6], 2048
    $region29: #{tpu_custom_call.1} parent=1 // pred_fallthru
      _
    %1518 = vsyncpa [#allocation6], 1

</llo_original>
